<compile_context>
chip_gen: v5e
topology: v5e:2x2
jax: 0.10.0
libtpu: 0.0.40
codegen_flags: <defaults>
</compile_context>

<pallas_src>
import functools
import math

import jax
import jax.numpy as jnp
from jax import lax
from jax.experimental import pallas as pl
from jax.experimental.pallas import tpu as pltpu

_HI = jax.lax.Precision.HIGHEST


# ---------------------------------------------------------------------------
# Fused kernel: Mamba block (selective SSM) + MetaMultiFC.
# ---------------------------------------------------------------------------
def _dual_kernel(x_ref, win_ref, convw_ref, rows_ref, wmid_ref, at_ref,
                 wout_ref, xf_ref, w1_ref, w2t_ref, w3c_ref,
                 slow_ref, fast_ref,
                 da_scr, dbx_scr, h_scr,
                 *, seq_len, d_conv, d_inner, d_state, use_nonlinear):
    """All weights pre-transposed so matmuls are (M, K) @ (K, N) on the MXU.

    x_ref:(L,d_model)  win_ref:(d_model,2*d_inner)  convw_ref:(d_conv,d_inner)
    rows_ref:(3,d_inner)=[conv_b; b_dt; D]  wmid_ref:(d_inner,2*d_state+d_inner)
    at_ref:(d_state,d_inner)=A.T  wout_ref:(d_inner,d_model)
    xf_ref:(N,1)  w1_ref:(1,H)  w2t_ref:(H,H)  w3c_ref:(H,1)
    slow_ref:(L,d_model)  fast_ref:(N,1)
    da_scr/dbx_scr/h_scr: (L,d_state,d_inner) f32 VMEM scratch.
    """
    L = seq_len

    # ---- fast path (MetaMultiFC): issued first so its two tiny MXU passes get
    # hidden under the slow path's serial scan by the scheduler. ----
    def nl(v):
        if use_nonlinear == "relu":
            return jnp.maximum(v, 0.0)
        if use_nonlinear == "tanh":
            return jnp.tanh(v)
        return v

    hf = nl(xf_ref[...] * w1_ref[...])                          # (N,1)*(1,H) broadcast (VPU)
    hf = nl(jnp.dot(hf, w2t_ref[...], preferred_element_type=jnp.float32))   # MXU
    fast_ref[...] = jnp.dot(hf, w3c_ref[...], preferred_element_type=jnp.float32)

    # ---- slow path (Mamba block) ----
    x = x_ref[...]                                              # (L, d_model)

    # in_proj: single MXU pass, lane-slice the x / z halves.
    xz = jnp.dot(x, win_ref[...], preferred_element_type=jnp.float32)       # (L, 2*d_inner)
    xin = xz[:, :d_inner]
    z = xz[:, d_inner:]

    # causal depthwise conv1d (d_conv static taps), vectorized over all timesteps.
    x_pad = jnp.concatenate(
        [jnp.zeros((d_conv - 1, d_inner), jnp.float32), xin], axis=0)
    convw = convw_ref[...]                                      # (d_conv, d_inner)
    conv = rows_ref[0:1, :]                                     # conv bias (1, d_inner)
    for k in range(d_conv):
        conv = conv + convw[k:k + 1, :] * x_pad[k:k + L, :]
    xc = conv * jax.nn.sigmoid(conv)                            # SiLU, full-width f32

    # Fused x_proj(B, C) + folded dt_proj: one (L,d_inner)@(d_inner,2S+d_inner) pass.
    mid = jnp.dot(xc, wmid_ref[...], preferred_element_type=jnp.float32)
    bmat = mid[:, :d_state]                                     # (L, d_state)
    cmat = mid[:, d_state:2 * d_state]                          # (L, d_state)
    dt = mid[:, 2 * d_state:] + rows_ref[1:2, :]                # + b_dt   (L, d_inner)
    dt = jnp.maximum(dt, 0.0) + jnp.log(1.0 + jnp.exp(-jnp.abs(dt)))         # softplus
    dtxc = dt * xc                                              # (L, d_inner)

    # Bulk (off the serial chain): discretized A and B*x for every step at once.
    a_t = at_ref[...]                                           # (d_state, d_inner)
    da_scr[...] = jnp.exp(dt[:, None, :] * a_t[None, :, :])     # (L, d_state, d_inner)
    dbx_scr[...] = bmat[:, :, None] * dtxc[:, None, :]          # (L, d_state, d_inner)

    # Serial selective scan, fully unrolled (L small & static).  Only the fma
    # chain on h is serial; the per-step h store rides the spare vst slot.
    h = jnp.zeros((d_state, d_inner), jnp.float32)
    for t in range(L):
        h = da_scr[t] * h + dbx_scr[t]
        h_scr[t] = h

    # C-weighted output as one bulk contraction over the state dim.
    y = jnp.sum(h_scr[...] * cmat[:, :, None], axis=1)          # (L, d_inner)
    y = y + xc * rows_ref[2:3, :]                               # D skip connection
    y = y * (z * jax.nn.sigmoid(z))                             # gate with SiLU(z)
    slow_ref[...] = jnp.dot(y, wout_ref[...], preferred_element_type=jnp.float32)


# ---------------------------------------------------------------------------
# One-time weight prep (pre-transpose / fold / pack) — cached, not per call.
# ---------------------------------------------------------------------------
def prepare_meta_dual_grad_params(params, *, d_state, d_conv, dt_rank):
    slow, fast = params["slow"], params["fast"]
    d_inner = slow["W_in"].shape[0] // 2

    win_t = jnp.transpose(slow["W_in"])                          # (d_model, 2*d_inner)
    conv_w = jnp.transpose(slow["conv_w"][:, 0, :])              # (d_conv, d_inner)
    w_x = slow["W_x"]                                            # (dt_rank+2S, d_inner)
    wx_b = jnp.transpose(w_x[dt_rank:dt_rank + d_state])         # (d_inner, d_state)
    wx_c = jnp.transpose(w_x[dt_rank + d_state:])                # (d_inner, d_state)
    # Fold the dt_rank bottleneck: dt_lin = xc @ (W_dt @ W_x[:dt_rank]).T
    wdt_c = jnp.transpose(jnp.dot(slow["W_dt"], w_x[:dt_rank], precision=_HI))
    wmid = jnp.concatenate([wx_b, wx_c, wdt_c], axis=1)          # (d_inner, 2S+d_inner)
    rows3 = jnp.stack([slow["conv_b"], slow["b_dt"], slow["D"]], axis=0)     # (3, d_inner)
    a_t = jnp.transpose(-jnp.exp(slow["A_log"]))                 # (d_state, d_inner)
    w_out = jnp.transpose(slow["W_out"])                         # (d_inner, d_model)

    return {
        "win_t": win_t, "conv_w": conv_w, "rows3": rows3, "wmid": wmid,
        "a_t": a_t, "w_out": w_out,
        "w1_row": jnp.transpose(fast["w1"]),                     # (1, H)
        "w2_t": jnp.transpose(fast["w2"]),                       # (H, H)
        "w3_col": jnp.transpose(fast["w3"]),                     # (H, 1)
        "d_inner": int(d_inner), "d_state": int(d_state), "d_conv": int(d_conv),
    }


# ---------------------------------------------------------------------------
# MetaDualGrad forward: ONE fused pallas_call with two outputs.
# ---------------------------------------------------------------------------
def meta_dual_grad_forward(x, history_x, prepped, *, use_nonlinear):
    b, seq_len, d_model = history_x.shape
    assert b == 1, "MetaDualGrad feeds history_x.view(1, -1, d_model)"
    d_inner = prepped["d_inner"]
    d_state = prepped["d_state"]
    d_conv = prepped["d_conv"]
    n_fast = x.shape[0]
    hidden = prepped["w2_t"].shape[0]

    flops = (2 * seq_len * d_model * 2 * d_inner                 # in_proj
             + 2 * seq_len * d_inner * d_conv                    # depthwise conv
             + 2 * seq_len * d_inner * (2 * d_state + d_inner)   # fused mid proj
             + 6 * seq_len * d_state * d_inner                   # scan + C contraction
             + 2 * seq_len * d_inner * d_model                   # out_proj
             + 2 * n_fast * hidden * (hidden + 2))               # MetaMultiFC
    transcendentals = (4 * seq_len * d_inner                     # 2 sigmoids + softplus
                       + seq_len * d_state * d_inner             # exp(dt*A)
                       + 2 * n_fast * hidden)                    # tanh
    bytes_accessed = 4 * (history_x.size + x.size
                          + prepped["win_t"].size + prepped["conv_w"].size
                          + prepped["rows3"].size + prepped["wmid"].size
                          + prepped["a_t"].size + prepped["w_out"].size
                          + prepped["w1_row"].size + prepped["w2_t"].size
                          + prepped["w3_col"].size
                          + seq_len * d_model + n_fast)

    vmem = pl.BlockSpec(memory_space=pltpu.MemorySpace.VMEM)
    slow2d, fast = pl.pallas_call(
        functools.partial(_dual_kernel, seq_len=seq_len, d_conv=d_conv,
                          d_inner=d_inner, d_state=d_state,
                          use_nonlinear=use_nonlinear),
        out_shape=(jax.ShapeDtypeStruct((seq_len, d_model), jnp.float32),
                   jax.ShapeDtypeStruct((n_fast, 1), jnp.float32)),
        in_specs=[vmem] * 11,
        out_specs=(vmem, vmem),
        scratch_shapes=[pltpu.VMEM((seq_len, d_state, d_inner), jnp.float32),
                        pltpu.VMEM((seq_len, d_state, d_inner), jnp.float32),
                        pltpu.VMEM((seq_len, d_state, d_inner), jnp.float32)],
        cost_estimate=pl.CostEstimate(flops=int(flops),
                                      transcendentals=int(transcendentals),
                                      bytes_accessed=int(bytes_accessed)),
    )(history_x[0], prepped["win_t"], prepped["conv_w"], prepped["rows3"],
      prepped["wmid"], prepped["a_t"], prepped["w_out"],
      x, prepped["w1_row"], prepped["w2_t"], prepped["w3_col"])

    return slow2d[None, :, :], fast


# ---------------------------------------------------------------------------
# Pure-JAX references (same math, no Pallas) for the correctness check.
# ---------------------------------------------------------------------------
def _mamba_reference(history_x, p, d_state, d_conv, dt_rank):
    x = history_x[0]
    seq_len, _ = x.shape
    d_inner = p["W_in"].shape[0] // 2

    xz = jnp.dot(x, p["W_in"].T, precision=_HI)
    xin, z = xz[:, :d_inner], xz[:, d_inner:]
    w = p["conv_w"][:, 0, :]                                    # (d_inner, d_conv)
    xpad = jnp.concatenate([jnp.zeros((d_conv - 1, d_inner), jnp.float32), xin], 0)
    conv = p["conv_b"][None, :]
    for k in range(d_conv):
        conv = conv + w[:, k][None, :] * xpad[k:k + seq_len]
    xc = jax.nn.silu(conv)

    xdbl = jnp.dot(xc, p["W_x"].T, precision=_HI)
    dt_in = xdbl[:, :dt_rank]
    bmat = xdbl[:, dt_rank:dt_rank + d_state]
    cmat = xdbl[:, dt_rank + d_state:]
    dt = jnp.dot(dt_in, p["W_dt"].T, precision=_HI) + p["b_dt"][None, :]
    dt = jnp.maximum(dt, 0.0) + jnp.log(1.0 + jnp.exp(-jnp.abs(dt)))

    A = -jnp.exp(p["A_log"])                                    # (d_inner, d_state)
    dA = jnp.exp(dt[:, :, None] * A[None, :, :])                # (L, d_inner, d_state)
    dBx = (dt * xc)[:, :, None] * bmat[:, None, :]              # (L, d_inner, d_state)

    def step(h, inp):
        dA_t, dBx_t, c_t = inp
        h = dA_t * h + dBx_t
        return h, (h * c_t[None, :]).sum(-1)

    _, ys = lax.scan(step, jnp.zeros((d_inner, d_state), jnp.float32),
                     (dA, dBx, cmat))
    y = ys + xc * p["D"][None, :]
    y = y * jax.nn.silu(z)
    return jnp.dot(y, p["W_out"].T, precision=_HI)[None]


def _multi_fc_reference(x, p, use_nonlinear):
    def nl(v):
        if use_nonlinear == "relu":
            return jnp.maximum(v, 0.0)
        if use_nonlinear == "tanh":
            return jnp.tanh(v)
        return v
    h = nl(jnp.dot(x, p["w1"].T, precision=_HI))
    h = nl(jnp.dot(h, p["w2"].T, precision=_HI))
    return jnp.dot(h, p["w3"].T, precision=_HI)


# ---------------------------------------------------------------------------
# Parameter init (deterministic, PyTorch-flavoured uniform + S4D-real A).
# ---------------------------------------------------------------------------
def init_params(key, *, d_model, d_state, d_conv, expand, hidden_size):
    d_inner = expand * d_model
    dt_rank = max(1, math.ceil(d_model / 16))
    ks = jax.random.split(key, 10)
    u = lambda k, shape, s: jax.random.uniform(k, shape, jnp.float32, -s, s)
    slow = {
        "W_in": u(ks[0], (2 * d_inner, d_model), 1.0 / math.sqrt(d_model)),
        "conv_w": u(ks[1], (d_inner, 1, d_conv), 1.0 / math.sqrt(d_conv)),
        "conv_b": u(ks[2], (d_inner,), 1.0 / math.sqrt(d_conv)),
        "W_x": u(ks[3], (dt_rank + 2 * d_state, d_inner), 1.0 / math.sqrt(d_inner)),
        "W_dt": u(ks[4], (d_inner, dt_rank), 1.0 / math.sqrt(max(dt_rank, 1))),
        "b_dt": u(ks[5], (d_inner,), 0.1),
        "A_log": jnp.log(jnp.tile(
            jnp.arange(1, d_state + 1, dtype=jnp.float32)[None, :], (d_inner, 1))),
        "D": jnp.ones((d_inner,), jnp.float32),
        "W_out": u(ks[6], (d_model, d_inner), 1.0 / math.sqrt(d_inner)),
    }
    h = hidden_size
    fast = {
        "w1": u(ks[7], (h, 1), 1.0),
        "w2": u(ks[8], (h, h), 1.0 / math.sqrt(h)),
        "w3": u(ks[9], (1, h), 1.0 / math.sqrt(h)),
    }
    return {"slow": slow, "fast": fast}, dt_rank


if __name__ == "__main__":
    D_MODEL, D_STATE, D_CONV, EXPAND = 16, 16, 4, 2
    HIDDEN, USE_NONLINEAR = 32, "tanh"
    SEQ_LEN, N_FAST = 16, 16

    key = jax.random.PRNGKey(0)
    kx, kh, kp = jax.random.split(key, 3)
    x = jax.random.normal(kx, (N_FAST, 1), jnp.float32)                 # x.view(-1, 1)
    history_x = jax.random.normal(kh, (1, SEQ_LEN, D_MODEL), jnp.float32)

    params, dt_rank = init_params(kp, d_model=D_MODEL, d_state=D_STATE,
                                  d_conv=D_CONV, expand=EXPAND,
                                  hidden_size=HIDDEN)

    # One-time (cached) weight prep — kept out of the per-call forward path.
    prepped = prepare_meta_dual_grad_params(params, d_state=D_STATE,
                                            d_conv=D_CONV, dt_rank=dt_rank)
    prepped = jax.tree_util.tree_map(
        lambda v: jax.block_until_ready(v) if isinstance(v, jax.Array) else v, prepped)

    slow_grad, fast_grad = meta_dual_grad_forward(
        x, history_x, prepped, use_nonlinear=USE_NONLINEAR)
    jax.block_until_ready((slow_grad, fast_grad))

    ref_slow = _mamba_reference(history_x, params["slow"], D_STATE, D_CONV, dt_rank)
    ref_fast = _multi_fc_reference(x, params["fast"], USE_NONLINEAR)

    assert slow_grad.shape == (1, SEQ_LEN, D_MODEL)
    assert fast_grad.shape == (N_FAST, 1)
    assert jnp.allclose(slow_grad, ref_slow, atol=1e-4, rtol=1e-4), (
        float(jnp.max(jnp.abs(slow_grad - ref_slow))))
    assert jnp.allclose(fast_grad, ref_fast, atol=1e-4, rtol=1e-4), (
        float(jnp.max(jnp.abs(fast_grad - ref_fast))))

    print("KERNEL_OK")
</pallas_src>

<mosaic_0001>
module attributes {stable_mosaic.version = 11 : i64} {
  func.func @_dual_kernel(%arg0: memref<16x16xf32, #tpu.memory_space<vmem>>, %arg1: memref<16x64xf32, #tpu.memory_space<vmem>>, %arg2: memref<4x32xf32, #tpu.memory_space<vmem>>, %arg3: memref<3x32xf32, #tpu.memory_space<vmem>>, %arg4: memref<32x64xf32, #tpu.memory_space<vmem>>, %arg5: memref<16x32xf32, #tpu.memory_space<vmem>>, %arg6: memref<32x16xf32, #tpu.memory_space<vmem>>, %arg7: memref<16x1xf32, #tpu.memory_space<vmem>>, %arg8: memref<1x32xf32, #tpu.memory_space<vmem>>, %arg9: memref<32x32xf32, #tpu.memory_space<vmem>>, %arg10: memref<32x1xf32, #tpu.memory_space<vmem>>, %arg11: memref<16x16xf32, #tpu.memory_space<vmem>>, %arg12: memref<16x1xf32, #tpu.memory_space<vmem>>, %arg13: memref<16x16x32xf32, #tpu.memory_space<vmem>>, %arg14: memref<16x16x32xf32, #tpu.memory_space<vmem>>, %arg15: memref<16x16x32xf32, #tpu.memory_space<vmem>>) attributes {dimension_semantics = [], scalar_prefetch = 0 : i64, scratch_operands = 3 : i64, tpu.core_type = #tpu.core_type<tc>} {
    %c0 = arith.constant 0 : index
    %c0_0 = arith.constant 0 : index
    %0 = vector.load %arg7[%c0, %c0_0] : memref<16x1xf32, #tpu.memory_space<vmem>>, vector<16x1xf32>
    %c0_1 = arith.constant 0 : index
    %c0_2 = arith.constant 0 : index
    %1 = vector.load %arg8[%c0_1, %c0_2] : memref<1x32xf32, #tpu.memory_space<vmem>>, vector<1x32xf32>
    %2 = vector.broadcast %0 : vector<16x1xf32> to vector<16x32xf32>
    %3 = vector.broadcast %1 : vector<1x32xf32> to vector<16x32xf32>
    %4 = arith.mulf %2, %3 : vector<16x32xf32>
    %5 = math.tanh %4 : vector<16x32xf32>
    %c0_3 = arith.constant 0 : index
    %c0_4 = arith.constant 0 : index
    %6 = vector.load %arg9[%c0_3, %c0_4] : memref<32x32xf32, #tpu.memory_space<vmem>>, vector<32x32xf32>
    %cst = arith.constant dense<0.000000e+00> : vector<16x32xf32>
    %7 = tpu.matmul %5, %6, %cst {dimension_numbers = #tpu.dot_dimension_numbers<[1], [0], [0], [1], [0, 0, 1, 1], [], []>} : vector<16x32xf32>, vector<32x32xf32>, vector<16x32xf32> -> vector<16x32xf32>
    %8 = math.tanh %7 : vector<16x32xf32>
    %c0_5 = arith.constant 0 : index
    %c0_6 = arith.constant 0 : index
    %9 = vector.load %arg10[%c0_5, %c0_6] : memref<32x1xf32, #tpu.memory_space<vmem>>, vector<32x1xf32>
    %cst_7 = arith.constant dense<0.000000e+00> : vector<16x1xf32>
    %10 = tpu.matmul %8, %9, %cst_7 {dimension_numbers = #tpu.dot_dimension_numbers<[1], [0], [0], [1], [0, 0, 1, 1], [], []>} : vector<16x32xf32>, vector<32x1xf32>, vector<16x1xf32> -> vector<16x1xf32>
    %c0_8 = arith.constant 0 : index
    %c0_9 = arith.constant 0 : index
    %11 = vector.load %arg12[%c0_8, %c0_9] : memref<16x1xf32, #tpu.memory_space<vmem>>, vector<16x1xf32>
    tpu.vector_store %arg12[%c0_8, %c0_9], %10 {strides = array<i32>} : memref<16x1xf32, #tpu.memory_space<vmem>>, vector<16x1xf32>,
    %c0_10 = arith.constant 0 : index
    %c0_11 = arith.constant 0 : index
    %12 = vector.load %arg0[%c0_10, %c0_11] : memref<16x16xf32, #tpu.memory_space<vmem>>, vector<16x16xf32>
    %c0_12 = arith.constant 0 : index
    %c0_13 = arith.constant 0 : index
    %13 = vector.load %arg1[%c0_12, %c0_13] : memref<16x64xf32, #tpu.memory_space<vmem>>, vector<16x64xf32>
    %cst_14 = arith.constant dense<0.000000e+00> : vector<16x64xf32>
    %14 = tpu.matmul %12, %13, %cst_14 {dimension_numbers = #tpu.dot_dimension_numbers<[1], [0], [0], [1], [0, 0, 1, 1], [], []>} : vector<16x16xf32>, vector<16x64xf32>, vector<16x64xf32> -> vector<16x64xf32>
    %15 = vector.extract_strided_slice %14 {offsets = [0, 0], sizes = [16, 32], strides = [1, 1]} : vector<16x64xf32> to vector<16x32xf32>
    %16 = vector.extract_strided_slice %14 {offsets = [0, 32], sizes = [16, 32], strides = [1, 1]} : vector<16x64xf32> to vector<16x32xf32>
    %cst_15 = arith.constant 0.000000e+00 : f32
    %17 = vector.broadcast %cst_15 : f32 to vector<3x32xf32>
    %18 = tpu.concatenate %17, %15 in 0 : vector<3x32xf32>, vector<16x32xf32> -> vector<19x32xf32>
    %c0_16 = arith.constant 0 : index
    %c0_17 = arith.constant 0 : index
    %19 = vector.load %arg2[%c0_16, %c0_17] : memref<4x32xf32, #tpu.memory_space<vmem>>, vector<4x32xf32>
    %c0_18 = arith.constant 0 : index
    %c0_19 = arith.constant 0 : index
    %20 = vector.load %arg3[%c0_18, %c0_19] : memref<3x32xf32, #tpu.memory_space<vmem>>, vector<1x32xf32>
    %21 = vector.extract_strided_slice %19 {offsets = [0, 0], sizes = [1, 32], strides = [1, 1]} : vector<4x32xf32> to vector<1x32xf32>
    %22 = vector.extract_strided_slice %18 {offsets = [0, 0], sizes = [16, 32], strides = [1, 1]} : vector<19x32xf32> to vector<16x32xf32>
    %23 = vector.broadcast %21 : vector<1x32xf32> to vector<16x32xf32>
    %24 = arith.mulf %23, %22 : vector<16x32xf32>
    %25 = vector.broadcast %20 : vector<1x32xf32> to vector<16x32xf32>
    %26 = arith.addf %25, %24 : vector<16x32xf32>
    %27 = vector.extract_strided_slice %19 {offsets = [1, 0], sizes = [1, 32], strides = [1, 1]} : vector<4x32xf32> to vector<1x32xf32>
    %28 = vector.extract_strided_slice %18 {offsets = [1, 0], sizes = [16, 32], strides = [1, 1]} : vector<19x32xf32> to vector<16x32xf32>
    %29 = vector.broadcast %27 : vector<1x32xf32> to vector<16x32xf32>
    %30 = arith.mulf %29, %28 : vector<16x32xf32>
    %31 = arith.addf %26, %30 : vector<16x32xf32>
    %32 = vector.extract_strided_slice %19 {offsets = [2, 0], sizes = [1, 32], strides = [1, 1]} : vector<4x32xf32> to vector<1x32xf32>
    %33 = vector.extract_strided_slice %18 {offsets = [2, 0], sizes = [16, 32], strides = [1, 1]} : vector<19x32xf32> to vector<16x32xf32>
    %34 = vector.broadcast %32 : vector<1x32xf32> to vector<16x32xf32>
    %35 = arith.mulf %34, %33 : vector<16x32xf32>
    %36 = arith.addf %31, %35 : vector<16x32xf32>
    %37 = vector.extract_strided_slice %19 {offsets = [3, 0], sizes = [1, 32], strides = [1, 1]} : vector<4x32xf32> to vector<1x32xf32>
    %38 = vector.extract_strided_slice %18 {offsets = [3, 0], sizes = [16, 32], strides = [1, 1]} : vector<19x32xf32> to vector<16x32xf32>
    %39 = vector.broadcast %37 : vector<1x32xf32> to vector<16x32xf32>
    %40 = arith.mulf %39, %38 : vector<16x32xf32>
    %41 = arith.addf %36, %40 : vector<16x32xf32>
    %42 = arith.negf %41 : vector<16x32xf32>
    %43 = math.exp %42 : vector<16x32xf32>
    %cst_20 = arith.constant 1.000000e+00 : f32
    %44 = vector.broadcast %cst_20 : f32 to vector<16x32xf32>
    %45 = arith.addf %44, %43 : vector<16x32xf32>
    %46 = arith.divf %44, %45 : vector<16x32xf32>
    %47 = arith.mulf %41, %46 : vector<16x32xf32>
    %c0_21 = arith.constant 0 : index
    %c0_22 = arith.constant 0 : index
    %48 = vector.load %arg4[%c0_21, %c0_22] : memref<32x64xf32, #tpu.memory_space<vmem>>, vector<32x64xf32>
    %cst_23 = arith.constant dense<0.000000e+00> : vector<16x64xf32>
    %49 = tpu.matmul %47, %48, %cst_23 {dimension_numbers = #tpu.dot_dimension_numbers<[1], [0], [0], [1], [0, 0, 1, 1], [], []>} : vector<16x32xf32>, vector<32x64xf32>, vector<16x64xf32> -> vector<16x64xf32>
    %50 = vector.extract_strided_slice %49 {offsets = [0, 0], sizes = [16, 16], strides = [1, 1]} : vector<16x64xf32> to vector<16x16xf32>
    %51 = vector.extract_strided_slice %49 {offsets = [0, 16], sizes = [16, 16], strides = [1, 1]} : vector<16x64xf32> to vector<16x16xf32>
    %52 = vector.extract_strided_slice %49 {offsets = [0, 32], sizes = [16, 32], strides = [1, 1]} : vector<16x64xf32> to vector<16x32xf32>
    %c1 = arith.constant 1 : index
    %c0_24 = arith.constant 0 : index
    %53 = vector.load %arg3[%c1, %c0_24] : memref<3x32xf32, #tpu.memory_space<vmem>>, vector<1x32xf32>
    %54 = vector.broadcast %53 : vector<1x32xf32> to vector<16x32xf32>
    %55 = arith.addf %52, %54 : vector<16x32xf32>
    %cst_25 = arith.constant 0.000000e+00 : f32
    %56 = vector.broadcast %cst_25 : f32 to vector<16x32xf32>
    %57 = arith.maximumf %55, %56 : vector<16x32xf32>
    %58 = math.absf %55 : vector<16x32xf32>
    %cst_26 = arith.constant 0.000000e+00 : f32
    %59 = vector.broadcast %cst_26 : f32 to vector<16x32xf32>
    %60 = arith.subf %59, %58 : vector<16x32xf32>
    %61 = math.exp %60 : vector<16x32xf32>
    %cst_27 = arith.constant 1.000000e+00 : f32
    %62 = vector.broadcast %cst_27 : f32 to vector<16x32xf32>
    %63 = arith.addf %62, %61 : vector<16x32xf32>
    %64 = math.log %63 : vector<16x32xf32>
    %65 = arith.addf %57, %64 : vector<16x32xf32>
    %66 = arith.mulf %65, %47 : vector<16x32xf32>
    %c0_28 = arith.constant 0 : index
    %c0_29 = arith.constant 0 : index
    %67 = vector.load %arg5[%c0_28, %c0_29] : memref<16x32xf32, #tpu.memory_space<vmem>>, vector<16x32xf32>
    %68 = vector.shape_cast %65 : vector<16x32xf32> to vector<16x1x32xf32>
    %69 = vector.shape_cast %67 : vector<16x32xf32> to vector<1x16x32xf32>
    %70 = vector.broadcast %68 : vector<16x1x32xf32> to vector<16x16x32xf32>
    %71 = vector.broadcast %69 : vector<1x16x32xf32> to vector<16x16x32xf32>
    %72 = arith.mulf %70, %71 : vector<16x16x32xf32>
    %73 = math.exp %72 : vector<16x16x32xf32>
    %c0_30 = arith.constant 0 : index
    %c0_31 = arith.constant 0 : index
    %c0_32 = arith.constant 0 : index
    %74 = vector.load %arg13[%c0_30, %c0_31, %c0_32] : memref<16x16x32xf32, #tpu.memory_space<vmem>>, vector<16x16x32xf32>
    tpu.vector_store %arg13[%c0_30, %c0_31, %c0_32], %73 {strides = array<i32>} : memref<16x16x32xf32, #tpu.memory_space<vmem>>, vector<16x16x32xf32>,
    %75 = vector.shape_cast %50 : vector<16x16xf32> to vector<16x16x1xf32>
    %76 = vector.shape_cast %66 : vector<16x32xf32> to vector<16x1x32xf32>
    %77 = vector.broadcast %75 : vector<16x16x1xf32> to vector<16x16x32xf32>
    %78 = vector.broadcast %76 : vector<16x1x32xf32> to vector<16x16x32xf32>
    %79 = arith.mulf %77, %78 : vector<16x16x32xf32>
    %c0_33 = arith.constant 0 : index
    %c0_34 = arith.constant 0 : index
    %c0_35 = arith.constant 0 : index
    %80 = vector.load %arg14[%c0_33, %c0_34, %c0_35] : memref<16x16x32xf32, #tpu.memory_space<vmem>>, vector<16x16x32xf32>
    tpu.vector_store %arg14[%c0_33, %c0_34, %c0_35], %79 {strides = array<i32>} : memref<16x16x32xf32, #tpu.memory_space<vmem>>, vector<16x16x32xf32>,
    %cst_36 = arith.constant 0.000000e+00 : f32
    %81 = vector.broadcast %cst_36 : f32 to vector<16x32xf32>
    %c0_37 = arith.constant 0 : index
    %c0_38 = arith.constant 0 : index
    %c0_39 = arith.constant 0 : index
    %82 = vector.load %arg13[%c0_37, %c0_38, %c0_39] : memref<16x16x32xf32, #tpu.memory_space<vmem>>, vector<1x16x32xf32>
    %83 = vector.shape_cast %82 : vector<1x16x32xf32> to vector<16x32xf32>
    %84 = arith.mulf %83, %81 : vector<16x32xf32>
    %c0_40 = arith.constant 0 : index
    %c0_41 = arith.constant 0 : index
    %c0_42 = arith.constant 0 : index
    %85 = vector.load %arg14[%c0_40, %c0_41, %c0_42] : memref<16x16x32xf32, #tpu.memory_space<vmem>>, vector<1x16x32xf32>
    %86 = vector.shape_cast %85 : vector<1x16x32xf32> to vector<16x32xf32>
    %87 = arith.addf %84, %86 : vector<16x32xf32>
    %c0_43 = arith.constant 0 : index
    %c0_44 = arith.constant 0 : index
    %c0_45 = arith.constant 0 : index
    %88 = vector.load %arg15[%c0_43, %c0_44, %c0_45] : memref<16x16x32xf32, #tpu.memory_space<vmem>>, vector<1x16x32xf32>
    %89 = vector.shape_cast %88 : vector<1x16x32xf32> to vector<16x32xf32>
    %90 = vector.shape_cast %87 : vector<16x32xf32> to vector<1x16x32xf32>
    tpu.vector_store %arg15[%c0_43, %c0_44, %c0_45], %90 {strides = array<i32>} : memref<16x16x32xf32, #tpu.memory_space<vmem>>, vector<1x16x32xf32>,
    %c1_46 = arith.constant 1 : index
    %c0_47 = arith.constant 0 : index
    %c0_48 = arith.constant 0 : index
    %91 = vector.load %arg13[%c1_46, %c0_47, %c0_48] : memref<16x16x32xf32, #tpu.memory_space<vmem>>, vector<1x16x32xf32>
    %92 = vector.shape_cast %91 : vector<1x16x32xf32> to vector<16x32xf32>
    %93 = arith.mulf %92, %87 : vector<16x32xf32>
    %c1_49 = arith.constant 1 : index
    %c0_50 = arith.constant 0 : index
    %c0_51 = arith.constant 0 : index
    %94 = vector.load %arg14[%c1_49, %c0_50, %c0_51] : memref<16x16x32xf32, #tpu.memory_space<vmem>>, vector<1x16x32xf32>
    %95 = vector.shape_cast %94 : vector<1x16x32xf32> to vector<16x32xf32>
    %96 = arith.addf %93, %95 : vector<16x32xf32>
    %c1_52 = arith.constant 1 : index
    %c0_53 = arith.constant 0 : index
    %c0_54 = arith.constant 0 : index
    %97 = vector.load %arg15[%c1_52, %c0_53, %c0_54] : memref<16x16x32xf32, #tpu.memory_space<vmem>>, vector<1x16x32xf32>
    %98 = vector.shape_cast %97 : vector<1x16x32xf32> to vector<16x32xf32>
    %99 = vector.shape_cast %96 : vector<16x32xf32> to vector<1x16x32xf32>
    tpu.vector_store %arg15[%c1_52, %c0_53, %c0_54], %99 {strides = array<i32>} : memref<16x16x32xf32, #tpu.memory_space<vmem>>, vector<1x16x32xf32>,
    %c2 = arith.constant 2 : index
    %c0_55 = arith.constant 0 : index
    %c0_56 = arith.constant 0 : index
    %100 = vector.load %arg13[%c2, %c0_55, %c0_56] : memref<16x16x32xf32, #tpu.memory_space<vmem>>, vector<1x16x32xf32>
    %101 = vector.shape_cast %100 : vector<1x16x32xf32> to vector<16x32xf32>
    %102 = arith.mulf %101, %96 : vector<16x32xf32>
    %c2_57 = arith.constant 2 : index
    %c0_58 = arith.constant 0 : index
    %c0_59 = arith.constant 0 : index
    %103 = vector.load %arg14[%c2_57, %c0_58, %c0_59] : memref<16x16x32xf32, #tpu.memory_space<vmem>>, vector<1x16x32xf32>
    %104 = vector.shape_cast %103 : vector<1x16x32xf32> to vector<16x32xf32>
    %105 = arith.addf %102, %104 : vector<16x32xf32>
    %c2_60 = arith.constant 2 : index
    %c0_61 = arith.constant 0 : index
    %c0_62 = arith.constant 0 : index
    %106 = vector.load %arg15[%c2_60, %c0_61, %c0_62] : memref<16x16x32xf32, #tpu.memory_space<vmem>>, vector<1x16x32xf32>
    %107 = vector.shape_cast %106 : vector<1x16x32xf32> to vector<16x32xf32>
    %108 = vector.shape_cast %105 : vector<16x32xf32> to vector<1x16x32xf32>
    tpu.vector_store %arg15[%c2_60, %c0_61, %c0_62], %108 {strides = array<i32>} : memref<16x16x32xf32, #tpu.memory_space<vmem>>, vector<1x16x32xf32>,
    %c3 = arith.constant 3 : index
    %c0_63 = arith.constant 0 : index
    %c0_64 = arith.constant 0 : index
    %109 = vector.load %arg13[%c3, %c0_63, %c0_64] : memref<16x16x32xf32, #tpu.memory_space<vmem>>, vector<1x16x32xf32>
    %110 = vector.shape_cast %109 : vector<1x16x32xf32> to vector<16x32xf32>
    %111 = arith.mulf %110, %105 : vector<16x32xf32>
    %c3_65 = arith.constant 3 : index
    %c0_66 = arith.constant 0 : index
    %c0_67 = arith.constant 0 : index
    %112 = vector.load %arg14[%c3_65, %c0_66, %c0_67] : memref<16x16x32xf32, #tpu.memory_space<vmem>>, vector<1x16x32xf32>
    %113 = vector.shape_cast %112 : vector<1x16x32xf32> to vector<16x32xf32>
    %114 = arith.addf %111, %113 : vector<16x32xf32>
    %c3_68 = arith.constant 3 : index
    %c0_69 = arith.constant 0 : index
    %c0_70 = arith.constant 0 : index
    %115 = vector.load %arg15[%c3_68, %c0_69, %c0_70] : memref<16x16x32xf32, #tpu.memory_space<vmem>>, vector<1x16x32xf32>
    %116 = vector.shape_cast %115 : vector<1x16x32xf32> to vector<16x32xf32>
    %117 = vector.shape_cast %114 : vector<16x32xf32> to vector<1x16x32xf32>
    tpu.vector_store %arg15[%c3_68, %c0_69, %c0_70], %117 {strides = array<i32>} : memref<16x16x32xf32, #tpu.memory_space<vmem>>, vector<1x16x32xf32>,
    %c4 = arith.constant 4 : index
    %c0_71 = arith.constant 0 : index
    %c0_72 = arith.constant 0 : index
    %118 = vector.load %arg13[%c4, %c0_71, %c0_72] : memref<16x16x32xf32, #tpu.memory_space<vmem>>, vector<1x16x32xf32>
    %119 = vector.shape_cast %118 : vector<1x16x32xf32> to vector<16x32xf32>
    %120 = arith.mulf %119, %114 : vector<16x32xf32>
    %c4_73 = arith.constant 4 : index
    %c0_74 = arith.constant 0 : index
    %c0_75 = arith.constant 0 : index
    %121 = vector.load %arg14[%c4_73, %c0_74, %c0_75] : memref<16x16x32xf32, #tpu.memory_space<vmem>>, vector<1x16x32xf32>
    %122 = vector.shape_cast %121 : vector<1x16x32xf32> to vector<16x32xf32>
    %123 = arith.addf %120, %122 : vector<16x32xf32>
    %c4_76 = arith.constant 4 : index
    %c0_77 = arith.constant 0 : index
    %c0_78 = arith.constant 0 : index
    %124 = vector.load %arg15[%c4_76, %c0_77, %c0_78] : memref<16x16x32xf32, #tpu.memory_space<vmem>>, vector<1x16x32xf32>
    %125 = vector.shape_cast %124 : vector<1x16x32xf32> to vector<16x32xf32>
    %126 = vector.shape_cast %123 : vector<16x32xf32> to vector<1x16x32xf32>
    tpu.vector_store %arg15[%c4_76, %c0_77, %c0_78], %126 {strides = array<i32>} : memref<16x16x32xf32, #tpu.memory_space<vmem>>, vector<1x16x32xf32>,
    %c5 = arith.constant 5 : index
    %c0_79 = arith.constant 0 : index
    %c0_80 = arith.constant 0 : index
    %127 = vector.load %arg13[%c5, %c0_79, %c0_80] : memref<16x16x32xf32, #tpu.memory_space<vmem>>, vector<1x16x32xf32>
    %128 = vector.shape_cast %127 : vector<1x16x32xf32> to vector<16x32xf32>
    %129 = arith.mulf %128, %123 : vector<16x32xf32>
    %c5_81 = arith.constant 5 : index
    %c0_82 = arith.constant 0 : index
    %c0_83 = arith.constant 0 : index
    %130 = vector.load %arg14[%c5_81, %c0_82, %c0_83] : memref<16x16x32xf32, #tpu.memory_space<vmem>>, vector<1x16x32xf32>
    %131 = vector.shape_cast %130 : vector<1x16x32xf32> to vector<16x32xf32>
    %132 = arith.addf %129, %131 : vector<16x32xf32>
    %c5_84 = arith.constant 5 : index
    %c0_85 = arith.constant 0 : index
    %c0_86 = arith.constant 0 : index
    %133 = vector.load %arg15[%c5_84, %c0_85, %c0_86] : memref<16x16x32xf32, #tpu.memory_space<vmem>>, vector<1x16x32xf32>
    %134 = vector.shape_cast %133 : vector<1x16x32xf32> to vector<16x32xf32>
    %135 = vector.shape_cast %132 : vector<16x32xf32> to vector<1x16x32xf32>
    tpu.vector_store %arg15[%c5_84, %c0_85, %c0_86], %135 {strides = array<i32>} : memref<16x16x32xf32, #tpu.memory_space<vmem>>, vector<1x16x32xf32>,
    %c6 = arith.constant 6 : index
    %c0_87 = arith.constant 0 : index
    %c0_88 = arith.constant 0 : index
    %136 = vector.load %arg13[%c6, %c0_87, %c0_88] : memref<16x16x32xf32, #tpu.memory_space<vmem>>, vector<1x16x32xf32>
    %137 = vector.shape_cast %136 : vector<1x16x32xf32> to vector<16x32xf32>
    %138 = arith.mulf %137, %132 : vector<16x32xf32>
    %c6_89 = arith.constant 6 : index
    %c0_90 = arith.constant 0 : index
    %c0_91 = arith.constant 0 : index
    %139 = vector.load %arg14[%c6_89, %c0_90, %c0_91] : memref<16x16x32xf32, #tpu.memory_space<vmem>>, vector<1x16x32xf32>
    %140 = vector.shape_cast %139 : vector<1x16x32xf32> to vector<16x32xf32>
    %141 = arith.addf %138, %140 : vector<16x32xf32>
    %c6_92 = arith.constant 6 : index
    %c0_93 = arith.constant 0 : index
    %c0_94 = arith.constant 0 : index
    %142 = vector.load %arg15[%c6_92, %c0_93, %c0_94] : memref<16x16x32xf32, #tpu.memory_space<vmem>>, vector<1x16x32xf32>
    %143 = vector.shape_cast %142 : vector<1x16x32xf32> to vector<16x32xf32>
    %144 = vector.shape_cast %141 : vector<16x32xf32> to vector<1x16x32xf32>
    tpu.vector_store %arg15[%c6_92, %c0_93, %c0_94], %144 {strides = array<i32>} : memref<16x16x32xf32, #tpu.memory_space<vmem>>, vector<1x16x32xf32>,
    %c7 = arith.constant 7 : index
    %c0_95 = arith.constant 0 : index
    %c0_96 = arith.constant 0 : index
    %145 = vector.load %arg13[%c7, %c0_95, %c0_96] : memref<16x16x32xf32, #tpu.memory_space<vmem>>, vector<1x16x32xf32>
    %146 = vector.shape_cast %145 : vector<1x16x32xf32> to vector<16x32xf32>
    %147 = arith.mulf %146, %141 : vector<16x32xf32>
    %c7_97 = arith.constant 7 : index
    %c0_98 = arith.constant 0 : index
    %c0_99 = arith.constant 0 : index
    %148 = vector.load %arg14[%c7_97, %c0_98, %c0_99] : memref<16x16x32xf32, #tpu.memory_space<vmem>>, vector<1x16x32xf32>
    %149 = vector.shape_cast %148 : vector<1x16x32xf32> to vector<16x32xf32>
    %150 = arith.addf %147, %149 : vector<16x32xf32>
    %c7_100 = arith.constant 7 : index
    %c0_101 = arith.constant 0 : index
    %c0_102 = arith.constant 0 : index
    %151 = vector.load %arg15[%c7_100, %c0_101, %c0_102] : memref<16x16x32xf32, #tpu.memory_space<vmem>>, vector<1x16x32xf32>
    %152 = vector.shape_cast %151 : vector<1x16x32xf32> to vector<16x32xf32>
    %153 = vector.shape_cast %150 : vector<16x32xf32> to vector<1x16x32xf32>
    tpu.vector_store %arg15[%c7_100, %c0_101, %c0_102], %153 {strides = array<i32>} : memref<16x16x32xf32, #tpu.memory_space<vmem>>, vector<1x16x32xf32>,
    %c8 = arith.constant 8 : index
    %c0_103 = arith.constant 0 : index
    %c0_104 = arith.constant 0 : index
    %154 = vector.load %arg13[%c8, %c0_103, %c0_104] : memref<16x16x32xf32, #tpu.memory_space<vmem>>, vector<1x16x32xf32>
    %155 = vector.shape_cast %154 : vector<1x16x32xf32> to vector<16x32xf32>
    %156 = arith.mulf %155, %150 : vector<16x32xf32>
    %c8_105 = arith.constant 8 : index
    %c0_106 = arith.constant 0 : index
    %c0_107 = arith.constant 0 : index
    %157 = vector.load %arg14[%c8_105, %c0_106, %c0_107] : memref<16x16x32xf32, #tpu.memory_space<vmem>>, vector<1x16x32xf32>
    %158 = vector.shape_cast %157 : vector<1x16x32xf32> to vector<16x32xf32>
    %159 = arith.addf %156, %158 : vector<16x32xf32>
    %c8_108 = arith.constant 8 : index
    %c0_109 = arith.constant 0 : index
    %c0_110 = arith.constant 0 : index
    %160 = vector.load %arg15[%c8_108, %c0_109, %c0_110] : memref<16x16x32xf32, #tpu.memory_space<vmem>>, vector<1x16x32xf32>
    %161 = vector.shape_cast %160 : vector<1x16x32xf32> to vector<16x32xf32>
    %162 = vector.shape_cast %159 : vector<16x32xf32> to vector<1x16x32xf32>
    tpu.vector_store %arg15[%c8_108, %c0_109, %c0_110], %162 {strides = array<i32>} : memref<16x16x32xf32, #tpu.memory_space<vmem>>, vector<1x16x32xf32>,
    %c9 = arith.constant 9 : index
    %c0_111 = arith.constant 0 : index
    %c0_112 = arith.constant 0 : index
    %163 = vector.load %arg13[%c9, %c0_111, %c0_112] : memref<16x16x32xf32, #tpu.memory_space<vmem>>, vector<1x16x32xf32>
    %164 = vector.shape_cast %163 : vector<1x16x32xf32> to vector<16x32xf32>
    %165 = arith.mulf %164, %159 : vector<16x32xf32>
    %c9_113 = arith.constant 9 : index
    %c0_114 = arith.constant 0 : index
    %c0_115 = arith.constant 0 : index
    %166 = vector.load %arg14[%c9_113, %c0_114, %c0_115] : memref<16x16x32xf32, #tpu.memory_space<vmem>>, vector<1x16x32xf32>
    %167 = vector.shape_cast %166 : vector<1x16x32xf32> to vector<16x32xf32>
    %168 = arith.addf %165, %167 : vector<16x32xf32>
    %c9_116 = arith.constant 9 : index
    %c0_117 = arith.constant 0 : index
    %c0_118 = arith.constant 0 : index
    %169 = vector.load %arg15[%c9_116, %c0_117, %c0_118] : memref<16x16x32xf32, #tpu.memory_space<vmem>>, vector<1x16x32xf32>
    %170 = vector.shape_cast %169 : vector<1x16x32xf32> to vector<16x32xf32>
    %171 = vector.shape_cast %168 : vector<16x32xf32> to vector<1x16x32xf32>
    tpu.vector_store %arg15[%c9_116, %c0_117, %c0_118], %171 {strides = array<i32>} : memref<16x16x32xf32, #tpu.memory_space<vmem>>, vector<1x16x32xf32>,
    %c10 = arith.constant 10 : index
    %c0_119 = arith.constant 0 : index
    %c0_120 = arith.constant 0 : index
    %172 = vector.load %arg13[%c10, %c0_119, %c0_120] : memref<16x16x32xf32, #tpu.memory_space<vmem>>, vector<1x16x32xf32>
    %173 = vector.shape_cast %172 : vector<1x16x32xf32> to vector<16x32xf32>
    %174 = arith.mulf %173, %168 : vector<16x32xf32>
    %c10_121 = arith.constant 10 : index
    %c0_122 = arith.constant 0 : index
    %c0_123 = arith.constant 0 : index
    %175 = vector.load %arg14[%c10_121, %c0_122, %c0_123] : memref<16x16x32xf32, #tpu.memory_space<vmem>>, vector<1x16x32xf32>
    %176 = vector.shape_cast %175 : vector<1x16x32xf32> to vector<16x32xf32>
    %177 = arith.addf %174, %176 : vector<16x32xf32>
    %c10_124 = arith.constant 10 : index
    %c0_125 = arith.constant 0 : index
    %c0_126 = arith.constant 0 : index
    %178 = vector.load %arg15[%c10_124, %c0_125, %c0_126] : memref<16x16x32xf32, #tpu.memory_space<vmem>>, vector<1x16x32xf32>
    %179 = vector.shape_cast %178 : vector<1x16x32xf32> to vector<16x32xf32>
    %180 = vector.shape_cast %177 : vector<16x32xf32> to vector<1x16x32xf32>
    tpu.vector_store %arg15[%c10_124, %c0_125, %c0_126], %180 {strides = array<i32>} : memref<16x16x32xf32, #tpu.memory_space<vmem>>, vector<1x16x32xf32>,
    %c11 = arith.constant 11 : index
    %c0_127 = arith.constant 0 : index
    %c0_128 = arith.constant 0 : index
    %181 = vector.load %arg13[%c11, %c0_127, %c0_128] : memref<16x16x32xf32, #tpu.memory_space<vmem>>, vector<1x16x32xf32>
    %182 = vector.shape_cast %181 : vector<1x16x32xf32> to vector<16x32xf32>
    %183 = arith.mulf %182, %177 : vector<16x32xf32>
    %c11_129 = arith.constant 11 : index
    %c0_130 = arith.constant 0 : index
    %c0_131 = arith.constant 0 : index
    %184 = vector.load %arg14[%c11_129, %c0_130, %c0_131] : memref<16x16x32xf32, #tpu.memory_space<vmem>>, vector<1x16x32xf32>
    %185 = vector.shape_cast %184 : vector<1x16x32xf32> to vector<16x32xf32>
    %186 = arith.addf %183, %185 : vector<16x32xf32>
    %c11_132 = arith.constant 11 : index
    %c0_133 = arith.constant 0 : index
    %c0_134 = arith.constant 0 : index
    %187 = vector.load %arg15[%c11_132, %c0_133, %c0_134] : memref<16x16x32xf32, #tpu.memory_space<vmem>>, vector<1x16x32xf32>
    %188 = vector.shape_cast %187 : vector<1x16x32xf32> to vector<16x32xf32>
    %189 = vector.shape_cast %186 : vector<16x32xf32> to vector<1x16x32xf32>
    tpu.vector_store %arg15[%c11_132, %c0_133, %c0_134], %189 {strides = array<i32>} : memref<16x16x32xf32, #tpu.memory_space<vmem>>, vector<1x16x32xf32>,
    %c12 = arith.constant 12 : index
    %c0_135 = arith.constant 0 : index
    %c0_136 = arith.constant 0 : index
    %190 = vector.load %arg13[%c12, %c0_135, %c0_136] : memref<16x16x32xf32, #tpu.memory_space<vmem>>, vector<1x16x32xf32>
    %191 = vector.shape_cast %190 : vector<1x16x32xf32> to vector<16x32xf32>
    %192 = arith.mulf %191, %186 : vector<16x32xf32>
    %c12_137 = arith.constant 12 : index
    %c0_138 = arith.constant 0 : index
    %c0_139 = arith.constant 0 : index
    %193 = vector.load %arg14[%c12_137, %c0_138, %c0_139] : memref<16x16x32xf32, #tpu.memory_space<vmem>>, vector<1x16x32xf32>
    %194 = vector.shape_cast %193 : vector<1x16x32xf32> to vector<16x32xf32>
    %195 = arith.addf %192, %194 : vector<16x32xf32>
    %c12_140 = arith.constant 12 : index
    %c0_141 = arith.constant 0 : index
    %c0_142 = arith.constant 0 : index
    %196 = vector.load %arg15[%c12_140, %c0_141, %c0_142] : memref<16x16x32xf32, #tpu.memory_space<vmem>>, vector<1x16x32xf32>
    %197 = vector.shape_cast %196 : vector<1x16x32xf32> to vector<16x32xf32>
    %198 = vector.shape_cast %195 : vector<16x32xf32> to vector<1x16x32xf32>
    tpu.vector_store %arg15[%c12_140, %c0_141, %c0_142], %198 {strides = array<i32>} : memref<16x16x32xf32, #tpu.memory_space<vmem>>, vector<1x16x32xf32>,
    %c13 = arith.constant 13 : index
    %c0_143 = arith.constant 0 : index
    %c0_144 = arith.constant 0 : index
    %199 = vector.load %arg13[%c13, %c0_143, %c0_144] : memref<16x16x32xf32, #tpu.memory_space<vmem>>, vector<1x16x32xf32>
    %200 = vector.shape_cast %199 : vector<1x16x32xf32> to vector<16x32xf32>
    %201 = arith.mulf %200, %195 : vector<16x32xf32>
    %c13_145 = arith.constant 13 : index
    %c0_146 = arith.constant 0 : index
    %c0_147 = arith.constant 0 : index
    %202 = vector.load %arg14[%c13_145, %c0_146, %c0_147] : memref<16x16x32xf32, #tpu.memory_space<vmem>>, vector<1x16x32xf32>
    %203 = vector.shape_cast %202 : vector<1x16x32xf32> to vector<16x32xf32>
    %204 = arith.addf %201, %203 : vector<16x32xf32>
    %c13_148 = arith.constant 13 : index
    %c0_149 = arith.constant 0 : index
    %c0_150 = arith.constant 0 : index
    %205 = vector.load %arg15[%c13_148, %c0_149, %c0_150] : memref<16x16x32xf32, #tpu.memory_space<vmem>>, vector<1x16x32xf32>
    %206 = vector.shape_cast %205 : vector<1x16x32xf32> to vector<16x32xf32>
    %207 = vector.shape_cast %204 : vector<16x32xf32> to vector<1x16x32xf32>
    tpu.vector_store %arg15[%c13_148, %c0_149, %c0_150], %207 {strides = array<i32>} : memref<16x16x32xf32, #tpu.memory_space<vmem>>, vector<1x16x32xf32>,
    %c14 = arith.constant 14 : index
    %c0_151 = arith.constant 0 : index
    %c0_152 = arith.constant 0 : index
    %208 = vector.load %arg13[%c14, %c0_151, %c0_152] : memref<16x16x32xf32, #tpu.memory_space<vmem>>, vector<1x16x32xf32>
    %209 = vector.shape_cast %208 : vector<1x16x32xf32> to vector<16x32xf32>
    %210 = arith.mulf %209, %204 : vector<16x32xf32>
    %c14_153 = arith.constant 14 : index
    %c0_154 = arith.constant 0 : index
    %c0_155 = arith.constant 0 : index
    %211 = vector.load %arg14[%c14_153, %c0_154, %c0_155] : memref<16x16x32xf32, #tpu.memory_space<vmem>>, vector<1x16x32xf32>
    %212 = vector.shape_cast %211 : vector<1x16x32xf32> to vector<16x32xf32>
    %213 = arith.addf %210, %212 : vector<16x32xf32>
    %c14_156 = arith.constant 14 : index
    %c0_157 = arith.constant 0 : index
    %c0_158 = arith.constant 0 : index
    %214 = vector.load %arg15[%c14_156, %c0_157, %c0_158] : memref<16x16x32xf32, #tpu.memory_space<vmem>>, vector<1x16x32xf32>
    %215 = vector.shape_cast %214 : vector<1x16x32xf32> to vector<16x32xf32>
    %216 = vector.shape_cast %213 : vector<16x32xf32> to vector<1x16x32xf32>
    tpu.vector_store %arg15[%c14_156, %c0_157, %c0_158], %216 {strides = array<i32>} : memref<16x16x32xf32, #tpu.memory_space<vmem>>, vector<1x16x32xf32>,
    %c15 = arith.constant 15 : index
    %c0_159 = arith.constant 0 : index
    %c0_160 = arith.constant 0 : index
    %217 = vector.load %arg13[%c15, %c0_159, %c0_160] : memref<16x16x32xf32, #tpu.memory_space<vmem>>, vector<1x16x32xf32>
    %218 = vector.shape_cast %217 : vector<1x16x32xf32> to vector<16x32xf32>
    %219 = arith.mulf %218, %213 : vector<16x32xf32>
    %c15_161 = arith.constant 15 : index
    %c0_162 = arith.constant 0 : index
    %c0_163 = arith.constant 0 : index
    %220 = vector.load %arg14[%c15_161, %c0_162, %c0_163] : memref<16x16x32xf32, #tpu.memory_space<vmem>>, vector<1x16x32xf32>
    %221 = vector.shape_cast %220 : vector<1x16x32xf32> to vector<16x32xf32>
    %222 = arith.addf %219, %221 : vector<16x32xf32>
    %c15_164 = arith.constant 15 : index
    %c0_165 = arith.constant 0 : index
    %c0_166 = arith.constant 0 : index
    %223 = vector.load %arg15[%c15_164, %c0_165, %c0_166] : memref<16x16x32xf32, #tpu.memory_space<vmem>>, vector<1x16x32xf32>
    %224 = vector.shape_cast %223 : vector<1x16x32xf32> to vector<16x32xf32>
    %225 = vector.shape_cast %222 : vector<16x32xf32> to vector<1x16x32xf32>
    tpu.vector_store %arg15[%c15_164, %c0_165, %c0_166], %225 {strides = array<i32>} : memref<16x16x32xf32, #tpu.memory_space<vmem>>, vector<1x16x32xf32>,
    %c0_167 = arith.constant 0 : index
    %c0_168 = arith.constant 0 : index
    %c0_169 = arith.constant 0 : index
    %226 = vector.load %arg15[%c0_167, %c0_168, %c0_169] : memref<16x16x32xf32, #tpu.memory_space<vmem>>, vector<16x16x32xf32>
    %227 = vector.shape_cast %51 : vector<16x16xf32> to vector<16x16x1xf32>
    %228 = vector.broadcast %227 : vector<16x16x1xf32> to vector<16x16x32xf32>
    %229 = arith.mulf %226, %228 : vector<16x16x32xf32>
    %cst_170 = arith.constant dense<0.000000e+00> : vector<16x32xf32>
    %230 = vector.multi_reduction <add>, %229, %cst_170 [1] : vector<16x16x32xf32> to vector<16x32xf32>
    %c2_171 = arith.constant 2 : index
    %c0_172 = arith.constant 0 : index
    %231 = vector.load %arg3[%c2_171, %c0_172] : memref<3x32xf32, #tpu.memory_space<vmem>>, vector<1x32xf32>
    %232 = vector.broadcast %231 : vector<1x32xf32> to vector<16x32xf32>
    %233 = arith.mulf %47, %232 : vector<16x32xf32>
    %234 = arith.addf %230, %233 : vector<16x32xf32>
    %235 = arith.negf %16 : vector<16x32xf32>
    %236 = math.exp %235 : vector<16x32xf32>
    %cst_173 = arith.constant 1.000000e+00 : f32
    %237 = vector.broadcast %cst_173 : f32 to vector<16x32xf32>
    %238 = arith.addf %237, %236 : vector<16x32xf32>
    %239 = arith.divf %237, %238 : vector<16x32xf32>
    %240 = arith.mulf %16, %239 : vector<16x32xf32>
    %241 = arith.mulf %234, %240 : vector<16x32xf32>
    %c0_174 = arith.constant 0 : index
    %c0_175 = arith.constant 0 : index
    %242 = vector.load %arg6[%c0_174, %c0_175] : memref<32x16xf32, #tpu.memory_space<vmem>>, vector<32x16xf32>
    %cst_176 = arith.constant dense<0.000000e+00> : vector<16x16xf32>
    %243 = tpu.matmul %241, %242, %cst_176 {dimension_numbers = #tpu.dot_dimension_numbers<[1], [0], [0], [1], [0, 0, 1, 1], [], []>} : vector<16x32xf32>, vector<32x16xf32>, vector<16x16xf32> -> vector<16x16xf32>
    %c0_177 = arith.constant 0 : index
    %c0_178 = arith.constant 0 : index
    %244 = vector.load %arg11[%c0_177, %c0_178] : memref<16x16xf32, #tpu.memory_space<vmem>>, vector<16x16xf32>
    tpu.vector_store %arg11[%c0_177, %c0_178], %243 {strides = array<i32>} : memref<16x16xf32, #tpu.memory_space<vmem>>, vector<16x16xf32>,
    return
  }
}

</mosaic_0001>

<llo_original>
// kernel: tpu_custom_call.1
$region0: #{tpu_custom_call.1}
  #allocation0 [shape = 'u32[]', space=smem, size = 0x4, offset = 0x4, fixed_abs, tag = 'smem constant byte address 0x4 - core index']
  #allocation1 [shape = 'u32[72,128]{1,0:T(1,128)}', space=vmem, size = 0x9000, scoped, tag = 'internal scratch']
  #allocation2 [shape = 'f32[16,16,32]{2,1,0:T(8,128)}', space=vmem, size = 0x20000, scoped, tag = 'scratch operand']
  #allocation3 [shape = 'f32[16,16,32]{2,1,0:T(8,128)}', space=vmem, size = 0x20000, scoped, tag = 'scratch operand']
  #allocation4 [shape = 'f32[16,16,32]{2,1,0:T(8,128)}', space=vmem, size = 0x20000, scoped, tag = 'scratch operand']
  %s0 = inlined_call_operand.vmem [shape: f32[16,16], index: 0, kind: input, shape index: {}]
  %s1 = inlined_call_operand.hbm [shape: f32[16,64], index: 1, kind: input, shape index: {}]
  %s2 = inlined_call_operand.vmem [shape: f32[4,32], index: 2, kind: input, shape index: {}]
  %s3 = inlined_call_operand.hbm [shape: f32[3,32], index: 3, kind: input, shape index: {}]
  %s4 = inlined_call_operand.vmem [shape: f32[32,64], index: 4, kind: input, shape index: {}]
  %s5 = inlined_call_operand.hbm [shape: f32[16,32], index: 5, kind: input, shape index: {}]
  %s6 = inlined_call_operand.vmem [shape: f32[32,16], index: 6, kind: input, shape index: {}]
  %s7 = inlined_call_operand.vmem [shape: f32[16,1], index: 7, kind: input, shape index: {}]
  %s8 = inlined_call_operand.vmem [shape: f32[1,32], index: 8, kind: input, shape index: {}]
  %s9 = inlined_call_operand.vmem [shape: f32[32,32], index: 9, kind: input, shape index: {}]
  %s10 = inlined_call_operand.vmem [shape: f32[32,1], index: 10, kind: input, shape index: {}]
  %s11 = inlined_call_operand.hbm [shape: f32[16,16], index: 11, kind: output, shape index: {0}]
  %s12 = inlined_call_operand.vmem [shape: f32[16,1], index: 12, kind: output, shape index: {1}]
  %13 = xla_tuple %s11, %s12
  %s14 = sld [smem:[#allocation0]]
  $region74: #{tpu_custom_call.1} parent=0
    _
  %s16 = ssub.s32 1, %s14
  %s17 = scalar_select 0, %s16, %s14
  $region1: #{tpu_custom_call.1} parent=0
    #allocation5 [shape = 'u8[8192]{0}', space=vmem, size = 0x2000, scoped, tag = 'input window, operand 1, single buffered']
    #allocation6 [shape = 's32[1]{0}', space=sflag, size = 0x4, scoped, tag = 'scoped memory for tpu_custom_call.1']
    #allocation7 [shape = 's32[1]{0}', space=sflag, size = 0x4, scoped, tag = 'scoped memory for tpu_custom_call.1']
    #allocation8 [shape = 'u8[2048]{0}', space=vmem, size = 0x800, scoped, tag = 'input window, operand 3, single buffered']
    #allocation9 [shape = 's32[1]{0}', space=sflag, size = 0x4, scoped, tag = 'scoped memory for tpu_custom_call.1']
    #allocation10 [shape = 'u8[8192]{0}', space=vmem, size = 0x2000, scoped, tag = 'input window, operand 5, single buffered']
    #allocation11 [shape = 'u8[8192]{0}', space=vmem, size = 0x2000, scoped, tag = 'output window, operand 0, single buffered']
    %18 = vsyncpa [#allocation6], 0
    %19 = vsyncpa [#allocation9], 0
    %20 = vsyncpa [#allocation7], 0
    // Predicated region
    $region2: #{tpu_custom_call.1} parent=1 // pred_check
      _
    $region3: #{tpu_custom_call.1} parent=1 // pred_check_branch
      %22 = sbr.rel (0) target = $region5
    $region4: #{tpu_custom_call.1} parent=1 // pred_region
      _
    $region5: #{tpu_custom_call.1} parent=1 // pred_fallthru
      _
    // Predicated region
    $region6: #{tpu_custom_call.1} parent=1 // pred_check
      _
    $region7: #{tpu_custom_call.1} parent=1 // pred_check_branch
      %24 = sbr.rel (0) target = $region9
    $region8: #{tpu_custom_call.1} parent=1 // pred_region
      %26 = vsyncadd [#allocation6], 0
      %s27 = sshll.u32 %s1, 4
      %s28 = int_to_ptr.hbm [resolvable:$true] %s27
      %s29 = sshll.u32 [#allocation5], 4
      %s30 = int_to_ptr.vmem [resolvable:$true] %s29
      %35 = dma.hbm_to_vmem [thread:$0]  %s28, 256, %s30, [#allocation6], 128, 128, 8
    $region9: #{tpu_custom_call.1} parent=1 // pred_fallthru
      _
    // Predicated region
    $region10: #{tpu_custom_call.1} parent=1 // pred_check
      _
    $region11: #{tpu_custom_call.1} parent=1 // pred_check_branch
      %37 = sbr.rel (0) target = $region13
    $region12: #{tpu_custom_call.1} parent=1 // pred_region
      _
    $region13: #{tpu_custom_call.1} parent=1 // pred_fallthru
      _
    // Predicated region
    $region14: #{tpu_custom_call.1} parent=1 // pred_check
      _
    $region15: #{tpu_custom_call.1} parent=1 // pred_check_branch
      %39 = sbr.rel (0) target = $region17
    $region16: #{tpu_custom_call.1} parent=1 // pred_region
      %41 = vsyncadd [#allocation9], 0
      %s43 = sshll.u32 %s3, 4
      %s44 = int_to_ptr.hbm [resolvable:$true] %s43
      %s45 = sshll.u32 [#allocation8], 4
      %s46 = int_to_ptr.vmem [resolvable:$true] %s45
      %48 = dma.hbm_to_vmem [thread:$0]  %s44, 64, %s46, [#allocation9]
    $region17: #{tpu_custom_call.1} parent=1 // pred_fallthru
      _
    // Predicated region
    $region18: #{tpu_custom_call.1} parent=1 // pred_check
      _
    $region19: #{tpu_custom_call.1} parent=1 // pred_check_branch
      %50 = sbr.rel (0) target = $region21
    $region20: #{tpu_custom_call.1} parent=1 // pred_region
      _
    $region21: #{tpu_custom_call.1} parent=1 // pred_fallthru
      _
    // Predicated region
    $region22: #{tpu_custom_call.1} parent=1 // pred_check
      _
    $region23: #{tpu_custom_call.1} parent=1 // pred_check_branch
      %52 = sbr.rel (0) target = $region25
    $region24: #{tpu_custom_call.1} parent=1 // pred_region
      %54 = vsyncadd [#allocation9], 0
      %s55 = sshll.u32 %s5, 4
      %s56 = int_to_ptr.hbm [resolvable:$true] %s55
      %s57 = sshll.u32 [#allocation10], 4
      %s58 = int_to_ptr.vmem [resolvable:$true] %s57
      %63 = dma.hbm_to_vmem [thread:$0]  %s56, 256, %s58, [#allocation9], 128, 128, 8
    $region25: #{tpu_custom_call.1} parent=1 // pred_fallthru
      _
    // Predicated region
    $region26: #{tpu_custom_call.1} parent=1 // pred_check
      _
    $region27: #{tpu_custom_call.1} parent=1 // pred_check_branch
      %65 = sbr.rel (0) target = $region29
    $region28: #{tpu_custom_call.1} parent=1 // pred_region
      _
    $region29: #{tpu_custom_call.1} parent=1 // pred_fallthru
      _
    // Predicated region
    $region30: #{tpu_custom_call.1} parent=1 // pred_check
      _
    $region31: #{tpu_custom_call.1} parent=1 // pred_check_branch
      %67 = sbr.rel (0) target = $region33
    $region32: #{tpu_custom_call.1} parent=1 // pred_region
      _
    $region33: #{tpu_custom_call.1} parent=1 // pred_fallthru
      _
    // Predicated region
    $region34: #{tpu_custom_call.1} parent=1 // pred_check
      _
    $region35: #{tpu_custom_call.1} parent=1 // pred_check_branch
      %69 = sbr.rel (0) target = $region37
    $region36: #{tpu_custom_call.1} parent=1 // pred_region
      _
    $region37: #{tpu_custom_call.1} parent=1 // pred_fallthru
      _
    // Predicated region
    $region38: #{tpu_custom_call.1} parent=1 // pred_check
      _
    $region39: #{tpu_custom_call.1} parent=1 // pred_check_branch
      %71 = sbr.rel (0) target = $region41
    $region40: #{tpu_custom_call.1} parent=1 // pred_region
      _
    $region41: #{tpu_custom_call.1} parent=1 // pred_fallthru
      _
    // Predicated region
    $region42: #{tpu_custom_call.1} parent=1 // pred_check
      _
    $region43: #{tpu_custom_call.1} parent=1 // pred_check_branch
      %73 = sbr.rel (0) target = $region45
    $region44: #{tpu_custom_call.1} parent=1 // pred_region
      _
    $region45: #{tpu_custom_call.1} parent=1 // pred_fallthru
      _
    // Predicated region
    $region46: #{tpu_custom_call.1} parent=1 // pred_check
      _
    $region47: #{tpu_custom_call.1} parent=1 // pred_check_branch
      %75 = sbr.rel (0) target = $region49
    $region48: #{tpu_custom_call.1} parent=1 // pred_region
      %77 = dma.done [#allocation6], 256
    $region49: #{tpu_custom_call.1} parent=1 // pred_fallthru
      _
    // Predicated region
    $region50: #{tpu_custom_call.1} parent=1 // pred_check
      _
    $region51: #{tpu_custom_call.1} parent=1 // pred_check_branch
      %79 = sbr.rel (0) target = $region53
    $region52: #{tpu_custom_call.1} parent=1 // pred_region
      %81 = dma.done [#allocation9], 64
    $region53: #{tpu_custom_call.1} parent=1 // pred_fallthru
      _
    // Predicated region
    $region54: #{tpu_custom_call.1} parent=1 // pred_check
      _
    $region55: #{tpu_custom_call.1} parent=1 // pred_check_branch
      %83 = sbr.rel (0) target = $region57
    $region56: #{tpu_custom_call.1} parent=1 // pred_region
      %85 = dma.done [#allocation9], 256
    $region57: #{tpu_custom_call.1} parent=1 // pred_fallthru
      _
    %v86 = vld [vmem:[%s7] sm:$0xff]
    %v87 = vld [vmem:[%s7 + $0x8] sm:$0xff]
    %v88 = vld [vmem:[%s8] sm:$0x1]
    %90 = vset.pattern.permute.xlu0 0
    %91 = vperm.xlu0 %90, %v86
    %v92 = vpop.permute.xlu0 %91
    %95 = vset.pattern.permute.xlu0 0
    %96 = vperm.xlu0 %95, %v87
    %v97 = vpop.permute.xlu0 %96
    %v100 = vperm.slane %v88, 0
    %v102 = vmul.f32 %v92, %v100
    %v103 = vmul.f32 %v97, %v100
    %v104 = vtanh.pop %v102
    %v105 = vtanh.pop %v103
    %v106 = vld [vmem:[%s9] sm:$0xff]
    %v107 = vld [vmem:[%s9 + $0x8] sm:$0xff]
    %v108 = vld [vmem:[%s9 + $0x10] sm:$0xff]
    %v109 = vld [vmem:[%s9 + $0x18] sm:$0xff]
    %vm110 = vcmask 261120
    %v112 = vsel %vm110, %v104, 0
    %v115 = vsel %vm110, %v105, 0
    %117 = vmatpush.msra.mxu0 0.0
    %118 = vmatpush.msra.mxu0 0.0
    %119 = vmatpush.msra.mxu0 0.0
    %120 = vmatpush.msra.mxu0 0.0
    %121 = vmatpush.msra.mxu0 0.0
    %122 = vmatpush.msra.mxu0 0.0
    %123 = vmatpush.msra.mxu0 0.0
    %124 = vmatpush.msra.mxu0 0.0
    %125 = vmatpush.msra.mxu0 0.0
    %126 = vmatpush.msra.mxu0 0.0
    %127 = vmatpush.msra.mxu0 0.0
    %128 = vmatpush.msra.mxu0 0.0
    %129 = vmatpush.msra.mxu0 %v109
    %130 = vmatpush.msra.mxu0 %v108
    %131 = vmatpush.msra.mxu0 %v107
    %132 = vmatpush.msra.mxu0 %v106
    %133 = vmatmul.f32.gmra.mxu0 %v112
    %v134 = vpop.f32.mrf.mxu0
    %v135 = vadd.f32 0.0, %v134
    %136 = vmatmul.f32.gmra.mxu0 %v115
    %v137 = vpop.f32.mrf.mxu0
    %v138 = vadd.f32 0.0, %v137
    %139 = vdwg.mxu0
    %v140 = vtanh.pop %v135
    %v141 = vtanh.pop %v138
    %v142 = vld [vmem:[%s10] sm:$0xff]
    %v143 = vld [vmem:[%s10 + $0x8] sm:$0xff]
    %v144 = vld [vmem:[%s10 + $0x10] sm:$0xff]
    %v145 = vld [vmem:[%s10 + $0x18] sm:$0xff]
    %v147 = vsel %vm110, %v140, 0
    %v150 = vsel %vm110, %v141, 0
    %152 = vmatpush.msra.mxu0 0.0
    %153 = vmatpush.msra.mxu0 0.0
    %154 = vmatpush.msra.mxu0 0.0
    %155 = vmatpush.msra.mxu0 0.0
    %156 = vmatpush.msra.mxu0 0.0
    %157 = vmatpush.msra.mxu0 0.0
    %158 = vmatpush.msra.mxu0 0.0
    %159 = vmatpush.msra.mxu0 0.0
    %160 = vmatpush.msra.mxu0 0.0
    %161 = vmatpush.msra.mxu0 0.0
    %162 = vmatpush.msra.mxu0 0.0
    %163 = vmatpush.msra.mxu0 0.0
    %164 = vmatpush.msra.mxu0 %v145
    %165 = vmatpush.msra.mxu0 %v144
    %166 = vmatpush.msra.mxu0 %v143
    %167 = vmatpush.msra.mxu0 %v142
    %168 = vmatmul.f32.gmra.mxu0 %v147
    %v169 = vpop.f32.mrf.mxu0
    %v170 = vadd.f32 0.0, %v169
    %171 = vmatmul.f32.gmra.mxu0 %v150
    %v172 = vpop.f32.mrf.mxu0
    %v173 = vadd.f32 0.0, %v172
    %174 = vdwg.mxu0
    %vm175 = vcmask 7168
    %176 = vst.msk [vmem:[%s12] sm:$0xff] %vm175, %v170
    %177 = vst.msk [vmem:[%s12 + $0x8] sm:$0xff] %vm175, %v173
    %v178 = vld [vmem:[%s0] sm:$0xff]
    %v179 = vld [vmem:[%s0 + $0x8] sm:$0xff]
    %v180 = vld [vmem:[#allocation5] sm:$0xff]
    %v181 = vld [vmem:[#allocation5 + $0x8] sm:$0xff]
    %vm182 = vcmask 130048
    %v184 = vsel %vm182, %v178, 0
    %v187 = vsel %vm182, %v179, 0
    %189 = vmatpush.msra.mxu0 0.0
    %190 = vmatpush.msra.mxu0 0.0
    %191 = vmatpush.msra.mxu0 0.0
    %192 = vmatpush.msra.mxu0 0.0
    %193 = vmatpush.msra.mxu0 0.0
    %194 = vmatpush.msra.mxu0 0.0
    %195 = vmatpush.msra.mxu0 0.0
    %196 = vmatpush.msra.mxu0 0.0
    %197 = vmatpush.msra.mxu0 0.0
    %198 = vmatpush.msra.mxu0 0.0
    %199 = vmatpush.msra.mxu0 0.0
    %200 = vmatpush.msra.mxu0 0.0
    %201 = vmatpush.msra.mxu0 0.0
    %202 = vmatpush.msra.mxu0 0.0
    %203 = vmatpush.msra.mxu0 %v181
    %204 = vmatpush.msra.mxu0 %v180
    %205 = vmatmul.f32.gmra.mxu0 %v184
    %v206 = vpop.f32.mrf.mxu0
    %v207 = vadd.f32 0.0, %v206
    %208 = vmatmul.f32.gmra.mxu0 %v187
    %v209 = vpop.f32.mrf.mxu0
    %v210 = vadd.f32 0.0, %v209
    %211 = vdwg.mxu0
    %vm214 = vcmask 1042432
    %v215 = vrot.slane %v207, 5
    %v216 = vrot.slane %v210, 5
    %v217 = vsel %vm214, %v215, %v216
    %v221 = vsel %vm214, 0.0, %v215
    %v222 = vld [vmem:[%s2] sm:$0xf]
    %v223 = vld [vmem:[#allocation8] sm:$0x1]
    %v224 = vperm.slane %v222, 0
    %v225 = vmul.f32 %v224, %v221
    %v226 = vmul.f32 %v224, %v217
    %v227 = vperm.slane %v223, 0
    %v228 = vadd.f32 %v227, %v225
    %v229 = vadd.f32 %v227, %v226
    %v230 = vperm.slane %v222, 1
    %v231 = vmul.f32 %v230, %v221
    %v232 = vmul.f32 %v230, %v217
    %v233 = vmul.f32 %v230, %v216
    %vm237 = vcmask 1046528
    %v238 = vrot.slane %v231, 1
    %v239 = vrot.slane %v232, 1
    %v240 = vsel %vm237, %v238, %v239
    %v241 = vrot.slane %v233, 1
    %v242 = vsel %vm237, %v239, %v241
    %v245 = vadd.f32 %v228, %v240
    %v246 = vadd.f32 %v229, %v242
    %v247 = vperm.slane %v222, 2
    %v248 = vmul.f32 %v247, %v221
    %v249 = vmul.f32 %v247, %v217
    %v250 = vmul.f32 %v247, %v216
    %vm254 = vcmask 1045504
    %v255 = vrot.slane %v248, 2
    %v256 = vrot.slane %v249, 2
    %v257 = vsel %vm254, %v255, %v256
    %v258 = vrot.slane %v250, 2
    %v259 = vsel %vm254, %v256, %v258
    %v262 = vadd.f32 %v245, %v257
    %v263 = vadd.f32 %v246, %v259
    %v264 = vperm.slane %v222, 3
    %v265 = vmul.f32 %v264, %v221
    %v266 = vmul.f32 %v264, %v217
    %v267 = vmul.f32 %v264, %v216
    %vm271 = vcmask 1044480
    %v272 = vrot.slane %v265, 3
    %v273 = vrot.slane %v266, 3
    %v274 = vsel %vm271, %v272, %v273
    %v275 = vrot.slane %v267, 3
    %v276 = vsel %vm271, %v273, %v275
    %v279 = vadd.f32 %v262, %v274
    %v280 = vadd.f32 %v263, %v276
    %v281 = vxor.u32 %v279, 2147483648
    %v282 = vxor.u32 %v280, 2147483648
    %v283 = vmul.f32 %v281, 1.442695
    %v284 = vpow.pop %v283
    %v285 = vmul.f32 %v282, 1.442695
    %v286 = vpow.pop %v285
    %v287 = vadd.f32 %v284, 1.0
    %v288 = vadd.f32 %v286, 1.0
    %v289 = vrcp.pop %v287
    %v290 = vmul.f32 %v287, %v289
    %v291 = vsub.f32 1.0, %v290
    %v292 = vmul.f32 %v289, %v291
    %v293 = vadd.f32 %v289, %v292
    %vm294 = vweird.f32 %v287
    %vm295 = vweird.f32 %v289
    %vm296 = vmor %vm294, %vm295
    %v297 = vsel %vm296, %v289, %v293
    %v298 = vand.u32 2147483647, %v287
    %vm299 = vcmp.eq.f32.partialorder %v298, 8.507059e+37
    %v300 = vand.u32 %v287, 2147483648
    %v301 = vor.u32 1.1754944e-38, %v300
    %v302 = vsel %vm299, %v301, %v297
    %v303 = vmul.f32 1.0, %v302
    %v304 = vrcp.pop %v288
    %v305 = vmul.f32 %v288, %v304
    %v306 = vsub.f32 1.0, %v305
    %v307 = vmul.f32 %v304, %v306
    %v308 = vadd.f32 %v304, %v307
    %vm309 = vweird.f32 %v288
    %vm310 = vweird.f32 %v304
    %vm311 = vmor %vm309, %vm310
    %v312 = vsel %vm311, %v304, %v308
    %v313 = vand.u32 2147483647, %v288
    %vm314 = vcmp.eq.f32.partialorder %v313, 8.507059e+37
    %v315 = vand.u32 %v288, 2147483648
    %v316 = vor.u32 1.1754944e-38, %v315
    %v317 = vsel %vm314, %v316, %v312
    %v318 = vmul.f32 1.0, %v317
    %v319 = vmul.f32 %v279, %v303
    %v320 = vmul.f32 %v280, %v318
    %v321 = vld [vmem:[%s4] sm:$0xff]
    %v322 = vld [vmem:[%s4 + $0x8] sm:$0xff]
    %v323 = vld [vmem:[%s4 + $0x10] sm:$0xff]
    %v324 = vld [vmem:[%s4 + $0x18] sm:$0xff]
    %v326 = vsel %vm110, %v319, 0
    %v329 = vsel %vm110, %v320, 0
    %331 = vmatpush.msra.mxu0 0.0
    %332 = vmatpush.msra.mxu0 0.0
    %333 = vmatpush.msra.mxu0 0.0
    %334 = vmatpush.msra.mxu0 0.0
    %335 = vmatpush.msra.mxu0 0.0
    %336 = vmatpush.msra.mxu0 0.0
    %337 = vmatpush.msra.mxu0 0.0
    %338 = vmatpush.msra.mxu0 0.0
    %339 = vmatpush.msra.mxu0 0.0
    %340 = vmatpush.msra.mxu0 0.0
    %341 = vmatpush.msra.mxu0 0.0
    %342 = vmatpush.msra.mxu0 0.0
    %343 = vmatpush.msra.mxu0 %v324
    %344 = vmatpush.msra.mxu0 %v323
    %345 = vmatpush.msra.mxu0 %v322
    %346 = vmatpush.msra.mxu0 %v321
    %347 = vmatmul.f32.gmra.mxu0 %v326
    %v348 = vpop.f32.mrf.mxu0
    %v349 = vadd.f32 0.0, %v348
    %350 = vmatmul.f32.gmra.mxu0 %v329
    %v351 = vpop.f32.mrf.mxu0
    %v352 = vadd.f32 0.0, %v351
    %353 = vdwg.mxu0
    %v354 = vld [vmem:[#allocation8 + $0x1] sm:$0x1]
    %v355 = vperm.slane %v354, 0
    %357 = vrot.lane.b32.xlu0 %v355, 32
    %v358 = vpop.permute.xlu0 %357
    %v360 = vadd.f32 %v349, %v358
    %v361 = vadd.f32 %v352, %v358
    %v362 = vmax.f32 %v360, 0.0
    %v363 = vmax.f32 %v361, 0.0
    %v364 = vand.u32 2147483647, %v360
    %v365 = vand.u32 2147483647, %v361
    %v366 = vsub.f32 0.0, %v364
    %v367 = vsub.f32 0.0, %v365
    %v368 = vmul.f32 %v366, 1.442695
    %v369 = vpow.pop %v368
    %v370 = vmul.f32 %v367, 1.442695
    %v371 = vpow.pop %v370
    %v372 = vadd.f32 %v369, 1.0
    %v373 = vadd.f32 %v371, 1.0
    %v374 = vlog2.pop %v372
    %v375 = vmul.f32 %v374, 0.6931472
    %v376 = vlog2.pop %v373
    %v377 = vmul.f32 %v376, 0.6931472
    %v378 = vadd.f32 %v362, %v375
    %v379 = vadd.f32 %v363, %v377
    %380 = vrot.lane.b32.xlu0 %v319, 32
    %v381 = vpop.permute.xlu0 %380
    %382 = vrot.lane.b32.xlu0 %v320, 32
    %v383 = vpop.permute.xlu0 %382
    %v386 = vmul.f32 %v378, %v381
    %v387 = vmul.f32 %v379, %v383
    %v388 = vld [vmem:[#allocation10] sm:$0xff]
    %v389 = vld [vmem:[#allocation10 + $0x8] sm:$0xff]
    %v392 = vrot.slane %v378, 1
    %v393 = vrot.slane %v378, 2
    %v394 = vrot.slane %v378, 3
    %v395 = vrot.slane %v378, 4
    %v396 = vrot.slane %v378, 5
    %v397 = vrot.slane %v378, 6
    %v398 = vrot.slane %v378, 7
    %v399 = vrot.slane %v379, 1
    %v400 = vrot.slane %v379, 2
    %v401 = vrot.slane %v379, 3
    %v402 = vrot.slane %v379, 4
    %v403 = vrot.slane %v379, 5
    %v404 = vrot.slane %v379, 6
    %v405 = vrot.slane %v379, 7
    %v406 = vperm.slane %v378, 0
    %v407 = vperm.slane %v392, 0
    %v408 = vperm.slane %v393, 0
    %v409 = vperm.slane %v394, 0
    %v410 = vperm.slane %v395, 0
    %v411 = vperm.slane %v396, 0
    %v412 = vperm.slane %v397, 0
    %v413 = vperm.slane %v398, 0
    %v414 = vperm.slane %v379, 0
    %v415 = vperm.slane %v399, 0
    %v416 = vperm.slane %v400, 0
    %v417 = vperm.slane %v401, 0
    %v418 = vperm.slane %v402, 0
    %v419 = vperm.slane %v403, 0
    %v420 = vperm.slane %v404, 0
    %v421 = vperm.slane %v405, 0
    %440 = vrot.lane.b32.xlu0 %v388, 32
    %v441 = vpop.permute.xlu0 %440
    %442 = vrot.lane.b32.xlu0 %v389, 32
    %v443 = vpop.permute.xlu0 %442
    %v446 = vmul.f32 %v406, %v441
    %v447 = vmul.f32 %v406, %v443
    %v448 = vmul.f32 %v407, %v441
    %v449 = vmul.f32 %v407, %v443
    %v450 = vmul.f32 %v408, %v441
    %v451 = vmul.f32 %v408, %v443
    %v452 = vmul.f32 %v409, %v441
    %v453 = vmul.f32 %v409, %v443
    %v454 = vmul.f32 %v410, %v441
    %v455 = vmul.f32 %v410, %v443
    %v456 = vmul.f32 %v411, %v441
    %v457 = vmul.f32 %v411, %v443
    %v458 = vmul.f32 %v412, %v441
    %v459 = vmul.f32 %v412, %v443
    %v460 = vmul.f32 %v413, %v441
    %v461 = vmul.f32 %v413, %v443
    %v462 = vmul.f32 %v414, %v441
    %v463 = vmul.f32 %v414, %v443
    %v464 = vmul.f32 %v415, %v441
    %v465 = vmul.f32 %v415, %v443
    %v466 = vmul.f32 %v416, %v441
    %v467 = vmul.f32 %v416, %v443
    %v468 = vmul.f32 %v417, %v441
    %v469 = vmul.f32 %v417, %v443
    %v470 = vmul.f32 %v418, %v441
    %v471 = vmul.f32 %v418, %v443
    %v472 = vmul.f32 %v419, %v441
    %v473 = vmul.f32 %v419, %v443
    %v474 = vmul.f32 %v420, %v441
    %v475 = vmul.f32 %v420, %v443
    %v476 = vmul.f32 %v421, %v441
    %v477 = vmul.f32 %v421, %v443
    %v478 = vmul.f32 %v446, 1.442695
    %v479 = vpow.pop %v478
    %v480 = vmul.f32 %v447, 1.442695
    %v481 = vpow.pop %v480
    %v482 = vmul.f32 %v448, 1.442695
    %v483 = vpow.pop %v482
    %v484 = vmul.f32 %v449, 1.442695
    %v485 = vpow.pop %v484
    %v486 = vmul.f32 %v450, 1.442695
    %v487 = vpow.pop %v486
    %v488 = vmul.f32 %v451, 1.442695
    %v489 = vpow.pop %v488
    %v490 = vmul.f32 %v452, 1.442695
    %v491 = vpow.pop %v490
    %v492 = vmul.f32 %v453, 1.442695
    %v493 = vpow.pop %v492
    %v494 = vmul.f32 %v454, 1.442695
    %v495 = vpow.pop %v494
    %v496 = vmul.f32 %v455, 1.442695
    %v497 = vpow.pop %v496
    %v498 = vmul.f32 %v456, 1.442695
    %v499 = vpow.pop %v498
    %v500 = vmul.f32 %v457, 1.442695
    %v501 = vpow.pop %v500
    %v502 = vmul.f32 %v458, 1.442695
    %v503 = vpow.pop %v502
    %v504 = vmul.f32 %v459, 1.442695
    %v505 = vpow.pop %v504
    %v506 = vmul.f32 %v460, 1.442695
    %v507 = vpow.pop %v506
    %v508 = vmul.f32 %v461, 1.442695
    %v509 = vpow.pop %v508
    %v510 = vmul.f32 %v462, 1.442695
    %v511 = vpow.pop %v510
    %v512 = vmul.f32 %v463, 1.442695
    %v513 = vpow.pop %v512
    %v514 = vmul.f32 %v464, 1.442695
    %v515 = vpow.pop %v514
    %v516 = vmul.f32 %v465, 1.442695
    %v517 = vpow.pop %v516
    %v518 = vmul.f32 %v466, 1.442695
    %v519 = vpow.pop %v518
    %v520 = vmul.f32 %v467, 1.442695
    %v521 = vpow.pop %v520
    %v522 = vmul.f32 %v468, 1.442695
    %v523 = vpow.pop %v522
    %v524 = vmul.f32 %v469, 1.442695
    %v525 = vpow.pop %v524
    %v526 = vmul.f32 %v470, 1.442695
    %v527 = vpow.pop %v526
    %v528 = vmul.f32 %v471, 1.442695
    %v529 = vpow.pop %v528
    %v530 = vmul.f32 %v472, 1.442695
    %v531 = vpow.pop %v530
    %v532 = vmul.f32 %v473, 1.442695
    %v533 = vpow.pop %v532
    %v534 = vmul.f32 %v474, 1.442695
    %v535 = vpow.pop %v534
    %v536 = vmul.f32 %v475, 1.442695
    %v537 = vpow.pop %v536
    %v538 = vmul.f32 %v476, 1.442695
    %v539 = vpow.pop %v538
    %v540 = vmul.f32 %v477, 1.442695
    %v541 = vpow.pop %v540
    %574 = vrot.lane.b32.xlu0 %v479, 96
    %v575 = vpop.permute.xlu0 %574
    %576 = vrot.lane.b32.xlu0 %v481, 96
    %v577 = vpop.permute.xlu0 %576
    %578 = vrot.lane.b32.xlu0 %v483, 96
    %v579 = vpop.permute.xlu0 %578
    %580 = vrot.lane.b32.xlu0 %v485, 96
    %v581 = vpop.permute.xlu0 %580
    %582 = vrot.lane.b32.xlu0 %v487, 96
    %v583 = vpop.permute.xlu0 %582
    %584 = vrot.lane.b32.xlu0 %v489, 96
    %v585 = vpop.permute.xlu0 %584
    %586 = vrot.lane.b32.xlu0 %v491, 96
    %v587 = vpop.permute.xlu0 %586
    %588 = vrot.lane.b32.xlu0 %v493, 96
    %v589 = vpop.permute.xlu0 %588
    %590 = vrot.lane.b32.xlu0 %v495, 96
    %v591 = vpop.permute.xlu0 %590
    %592 = vrot.lane.b32.xlu0 %v497, 96
    %v593 = vpop.permute.xlu0 %592
    %594 = vrot.lane.b32.xlu0 %v499, 96
    %v595 = vpop.permute.xlu0 %594
    %596 = vrot.lane.b32.xlu0 %v501, 96
    %v597 = vpop.permute.xlu0 %596
    %598 = vrot.lane.b32.xlu0 %v503, 96
    %v599 = vpop.permute.xlu0 %598
    %600 = vrot.lane.b32.xlu0 %v505, 96
    %v601 = vpop.permute.xlu0 %600
    %602 = vrot.lane.b32.xlu0 %v507, 96
    %v603 = vpop.permute.xlu0 %602
    %604 = vrot.lane.b32.xlu0 %v509, 96
    %v605 = vpop.permute.xlu0 %604
    %606 = vrot.lane.b32.xlu0 %v511, 96
    %v607 = vpop.permute.xlu0 %606
    %608 = vrot.lane.b32.xlu0 %v513, 96
    %v609 = vpop.permute.xlu0 %608
    %610 = vrot.lane.b32.xlu0 %v515, 96
    %v611 = vpop.permute.xlu0 %610
    %612 = vrot.lane.b32.xlu0 %v517, 96
    %v613 = vpop.permute.xlu0 %612
    %614 = vrot.lane.b32.xlu0 %v519, 96
    %v615 = vpop.permute.xlu0 %614
    %616 = vrot.lane.b32.xlu0 %v521, 96
    %v617 = vpop.permute.xlu0 %616
    %618 = vrot.lane.b32.xlu0 %v523, 96
    %v619 = vpop.permute.xlu0 %618
    %620 = vrot.lane.b32.xlu0 %v525, 96
    %v621 = vpop.permute.xlu0 %620
    %622 = vrot.lane.b32.xlu0 %v527, 96
    %v623 = vpop.permute.xlu0 %622
    %624 = vrot.lane.b32.xlu0 %v529, 96
    %v625 = vpop.permute.xlu0 %624
    %626 = vrot.lane.b32.xlu0 %v531, 96
    %v627 = vpop.permute.xlu0 %626
    %628 = vrot.lane.b32.xlu0 %v533, 96
    %v629 = vpop.permute.xlu0 %628
    %630 = vrot.lane.b32.xlu0 %v535, 96
    %v631 = vpop.permute.xlu0 %630
    %632 = vrot.lane.b32.xlu0 %v537, 96
    %v633 = vpop.permute.xlu0 %632
    %634 = vrot.lane.b32.xlu0 %v539, 96
    %v635 = vpop.permute.xlu0 %634
    %636 = vrot.lane.b32.xlu0 %v541, 96
    %v637 = vpop.permute.xlu0 %636
    %670 = vst.msk [vmem:[#allocation2] sm:$0xff] %vm110, %v575
    %671 = vst.msk [vmem:[#allocation2 + $0x8] sm:$0xff] %vm110, %v577
    %672 = vst.msk [vmem:[#allocation2 + $0x10] sm:$0xff] %vm110, %v579
    %673 = vst.msk [vmem:[#allocation2 + $0x18] sm:$0xff] %vm110, %v581
    %674 = vst.msk [vmem:[#allocation2 + $0x20] sm:$0xff] %vm110, %v583
    %675 = vst.msk [vmem:[#allocation2 + $0x28] sm:$0xff] %vm110, %v585
    %676 = vst.msk [vmem:[#allocation2 + $0x30] sm:$0xff] %vm110, %v587
    %677 = vst.msk [vmem:[#allocation2 + $0x38] sm:$0xff] %vm110, %v589
    %678 = vst.msk [vmem:[#allocation2 + $0x40] sm:$0xff] %vm110, %v591
    %679 = vst.msk [vmem:[#allocation2 + $0x48] sm:$0xff] %vm110, %v593
    %680 = vst.msk [vmem:[#allocation2 + $0x50] sm:$0xff] %vm110, %v595
    %681 = vst.msk [vmem:[#allocation2 + $0x58] sm:$0xff] %vm110, %v597
    %682 = vst.msk [vmem:[#allocation2 + $0x60] sm:$0xff] %vm110, %v599
    %683 = vst.msk [vmem:[#allocation2 + $0x68] sm:$0xff] %vm110, %v601
    %684 = vst.msk [vmem:[#allocation2 + $0x70] sm:$0xff] %vm110, %v603
    %685 = vst.msk [vmem:[#allocation2 + $0x78] sm:$0xff] %vm110, %v605
    %686 = vst.msk [vmem:[#allocation2 + $0x80] sm:$0xff] %vm110, %v607
    %687 = vst.msk [vmem:[#allocation2 + $0x88] sm:$0xff] %vm110, %v609
    %688 = vst.msk [vmem:[#allocation2 + $0x90] sm:$0xff] %vm110, %v611
    %689 = vst.msk [vmem:[#allocation2 + $0x98] sm:$0xff] %vm110, %v613
    %690 = vst.msk [vmem:[#allocation2 + $0xa0] sm:$0xff] %vm110, %v615
    %691 = vst.msk [vmem:[#allocation2 + $0xa8] sm:$0xff] %vm110, %v617
    %692 = vst.msk [vmem:[#allocation2 + $0xb0] sm:$0xff] %vm110, %v619
    %693 = vst.msk [vmem:[#allocation2 + $0xb8] sm:$0xff] %vm110, %v621
    %694 = vst.msk [vmem:[#allocation2 + $0xc0] sm:$0xff] %vm110, %v623
    %695 = vst.msk [vmem:[#allocation2 + $0xc8] sm:$0xff] %vm110, %v625
    %696 = vst.msk [vmem:[#allocation2 + $0xd0] sm:$0xff] %vm110, %v627
    %697 = vst.msk [vmem:[#allocation2 + $0xd8] sm:$0xff] %vm110, %v629
    %698 = vst.msk [vmem:[#allocation2 + $0xe0] sm:$0xff] %vm110, %v631
    %699 = vst.msk [vmem:[#allocation2 + $0xe8] sm:$0xff] %vm110, %v633
    %700 = vst.msk [vmem:[#allocation2 + $0xf0] sm:$0xff] %vm110, %v635
    %701 = vst.msk [vmem:[#allocation2 + $0xf8] sm:$0xff] %vm110, %v637
    %v702 = vperm.slane %v349, 0
    %v703 = vlaneseq
    %v704 = vshrl.u32 %v703, 7
    %706 = vset.pattern.permute.xlu0 %v704
    %707 = vperm.xlu0 %706, %v702
    %v708 = vpop.permute.xlu0 %707
    %v709 = vlaneseq
    %v710 = vshrl.u32 %v709, 7
    %v711 = vadd.s32 %v710, 8
    %712 = vset.pattern.permute.xlu0 %v711
    %713 = vperm.xlu0 %712, %v702
    %v714 = vpop.permute.xlu0 %713
    %v715 = vperm.slane %v349, 1
    %v716 = vlaneseq
    %v717 = vshrl.u32 %v716, 7
    %719 = vset.pattern.permute.xlu0 %v717
    %720 = vperm.xlu0 %719, %v715
    %v721 = vpop.permute.xlu0 %720
    %v722 = vlaneseq
    %v723 = vshrl.u32 %v722, 7
    %v724 = vadd.s32 %v723, 8
    %725 = vset.pattern.permute.xlu0 %v724
    %726 = vperm.xlu0 %725, %v715
    %v727 = vpop.permute.xlu0 %726
    %v728 = vperm.slane %v349, 2
    %v729 = vlaneseq
    %v730 = vshrl.u32 %v729, 7
    %732 = vset.pattern.permute.xlu0 %v730
    %733 = vperm.xlu0 %732, %v728
    %v734 = vpop.permute.xlu0 %733
    %v735 = vlaneseq
    %v736 = vshrl.u32 %v735, 7
    %v737 = vadd.s32 %v736, 8
    %738 = vset.pattern.permute.xlu0 %v737
    %739 = vperm.xlu0 %738, %v728
    %v740 = vpop.permute.xlu0 %739
    %v741 = vperm.slane %v349, 3
    %v742 = vlaneseq
    %v743 = vshrl.u32 %v742, 7
    %745 = vset.pattern.permute.xlu0 %v743
    %746 = vperm.xlu0 %745, %v741
    %v747 = vpop.permute.xlu0 %746
    %v748 = vlaneseq
    %v749 = vshrl.u32 %v748, 7
    %v750 = vadd.s32 %v749, 8
    %751 = vset.pattern.permute.xlu0 %v750
    %752 = vperm.xlu0 %751, %v741
    %v753 = vpop.permute.xlu0 %752
    %v754 = vperm.slane %v349, 4
    %v755 = vlaneseq
    %v756 = vshrl.u32 %v755, 7
    %758 = vset.pattern.permute.xlu0 %v756
    %759 = vperm.xlu0 %758, %v754
    %v760 = vpop.permute.xlu0 %759
    %v761 = vlaneseq
    %v762 = vshrl.u32 %v761, 7
    %v763 = vadd.s32 %v762, 8
    %764 = vset.pattern.permute.xlu0 %v763
    %765 = vperm.xlu0 %764, %v754
    %v766 = vpop.permute.xlu0 %765
    %v767 = vperm.slane %v349, 5
    %v768 = vlaneseq
    %v769 = vshrl.u32 %v768, 7
    %771 = vset.pattern.permute.xlu0 %v769
    %772 = vperm.xlu0 %771, %v767
    %v773 = vpop.permute.xlu0 %772
    %v774 = vlaneseq
    %v775 = vshrl.u32 %v774, 7
    %v776 = vadd.s32 %v775, 8
    %777 = vset.pattern.permute.xlu0 %v776
    %778 = vperm.xlu0 %777, %v767
    %v779 = vpop.permute.xlu0 %778
    %v780 = vperm.slane %v349, 6
    %v781 = vlaneseq
    %v782 = vshrl.u32 %v781, 7
    %784 = vset.pattern.permute.xlu0 %v782
    %785 = vperm.xlu0 %784, %v780
    %v786 = vpop.permute.xlu0 %785
    %v787 = vlaneseq
    %v788 = vshrl.u32 %v787, 7
    %v789 = vadd.s32 %v788, 8
    %790 = vset.pattern.permute.xlu0 %v789
    %791 = vperm.xlu0 %790, %v780
    %v792 = vpop.permute.xlu0 %791
    %v793 = vperm.slane %v349, 7
    %v794 = vlaneseq
    %v795 = vshrl.u32 %v794, 7
    %797 = vset.pattern.permute.xlu0 %v795
    %798 = vperm.xlu0 %797, %v793
    %v799 = vpop.permute.xlu0 %798
    %v800 = vlaneseq
    %v801 = vshrl.u32 %v800, 7
    %v802 = vadd.s32 %v801, 8
    %803 = vset.pattern.permute.xlu0 %v802
    %804 = vperm.xlu0 %803, %v793
    %v805 = vpop.permute.xlu0 %804
    %v806 = vperm.slane %v352, 0
    %v807 = vlaneseq
    %v808 = vshrl.u32 %v807, 7
    %810 = vset.pattern.permute.xlu0 %v808
    %811 = vperm.xlu0 %810, %v806
    %v812 = vpop.permute.xlu0 %811
    %v813 = vlaneseq
    %v814 = vshrl.u32 %v813, 7
    %v815 = vadd.s32 %v814, 8
    %816 = vset.pattern.permute.xlu0 %v815
    %817 = vperm.xlu0 %816, %v806
    %v818 = vpop.permute.xlu0 %817
    %v819 = vperm.slane %v352, 1
    %v820 = vlaneseq
    %v821 = vshrl.u32 %v820, 7
    %823 = vset.pattern.permute.xlu0 %v821
    %824 = vperm.xlu0 %823, %v819
    %v825 = vpop.permute.xlu0 %824
    %v826 = vlaneseq
    %v827 = vshrl.u32 %v826, 7
    %v828 = vadd.s32 %v827, 8
    %829 = vset.pattern.permute.xlu0 %v828
    %830 = vperm.xlu0 %829, %v819
    %v831 = vpop.permute.xlu0 %830
    %v832 = vperm.slane %v352, 2
    %v833 = vlaneseq
    %v834 = vshrl.u32 %v833, 7
    %836 = vset.pattern.permute.xlu0 %v834
    %837 = vperm.xlu0 %836, %v832
    %v838 = vpop.permute.xlu0 %837
    %v839 = vlaneseq
    %v840 = vshrl.u32 %v839, 7
    %v841 = vadd.s32 %v840, 8
    %842 = vset.pattern.permute.xlu0 %v841
    %843 = vperm.xlu0 %842, %v832
    %v844 = vpop.permute.xlu0 %843
    %v845 = vperm.slane %v352, 3
    %v846 = vlaneseq
    %v847 = vshrl.u32 %v846, 7
    %849 = vset.pattern.permute.xlu0 %v847
    %850 = vperm.xlu0 %849, %v845
    %v851 = vpop.permute.xlu0 %850
    %v852 = vlaneseq
    %v853 = vshrl.u32 %v852, 7
    %v854 = vadd.s32 %v853, 8
    %855 = vset.pattern.permute.xlu0 %v854
    %856 = vperm.xlu0 %855, %v845
    %v857 = vpop.permute.xlu0 %856
    %v858 = vperm.slane %v352, 4
    %v859 = vlaneseq
    %v860 = vshrl.u32 %v859, 7
    %862 = vset.pattern.permute.xlu0 %v860
    %863 = vperm.xlu0 %862, %v858
    %v864 = vpop.permute.xlu0 %863
    %v865 = vlaneseq
    %v866 = vshrl.u32 %v865, 7
    %v867 = vadd.s32 %v866, 8
    %868 = vset.pattern.permute.xlu0 %v867
    %869 = vperm.xlu0 %868, %v858
    %v870 = vpop.permute.xlu0 %869
    %v871 = vperm.slane %v352, 5
    %v872 = vlaneseq
    %v873 = vshrl.u32 %v872, 7
    %875 = vset.pattern.permute.xlu0 %v873
    %876 = vperm.xlu0 %875, %v871
    %v877 = vpop.permute.xlu0 %876
    %v878 = vlaneseq
    %v879 = vshrl.u32 %v878, 7
    %v880 = vadd.s32 %v879, 8
    %881 = vset.pattern.permute.xlu0 %v880
    %882 = vperm.xlu0 %881, %v871
    %v883 = vpop.permute.xlu0 %882
    %v884 = vperm.slane %v352, 6
    %v885 = vlaneseq
    %v886 = vshrl.u32 %v885, 7
    %888 = vset.pattern.permute.xlu0 %v886
    %889 = vperm.xlu0 %888, %v884
    %v890 = vpop.permute.xlu0 %889
    %v891 = vlaneseq
    %v892 = vshrl.u32 %v891, 7
    %v893 = vadd.s32 %v892, 8
    %894 = vset.pattern.permute.xlu0 %v893
    %895 = vperm.xlu0 %894, %v884
    %v896 = vpop.permute.xlu0 %895
    %v897 = vperm.slane %v352, 7
    %v898 = vlaneseq
    %v899 = vshrl.u32 %v898, 7
    %901 = vset.pattern.permute.xlu0 %v899
    %902 = vperm.xlu0 %901, %v897
    %v903 = vpop.permute.xlu0 %902
    %v904 = vlaneseq
    %v905 = vshrl.u32 %v904, 7
    %v906 = vadd.s32 %v905, 8
    %907 = vset.pattern.permute.xlu0 %v906
    %908 = vperm.xlu0 %907, %v897
    %v909 = vpop.permute.xlu0 %908
    %v912 = vrot.slane %v386, 1
    %v913 = vrot.slane %v386, 2
    %v914 = vrot.slane %v386, 3
    %v915 = vrot.slane %v386, 4
    %v916 = vrot.slane %v386, 5
    %v917 = vrot.slane %v386, 6
    %v918 = vrot.slane %v386, 7
    %v919 = vrot.slane %v387, 1
    %v920 = vrot.slane %v387, 2
    %v921 = vrot.slane %v387, 3
    %v922 = vrot.slane %v387, 4
    %v923 = vrot.slane %v387, 5
    %v924 = vrot.slane %v387, 6
    %v925 = vrot.slane %v387, 7
    %v926 = vperm.slane %v386, 0
    %v927 = vperm.slane %v912, 0
    %v928 = vperm.slane %v913, 0
    %v929 = vperm.slane %v914, 0
    %v930 = vperm.slane %v915, 0
    %v931 = vperm.slane %v916, 0
    %v932 = vperm.slane %v917, 0
    %v933 = vperm.slane %v918, 0
    %v934 = vperm.slane %v387, 0
    %v935 = vperm.slane %v919, 0
    %v936 = vperm.slane %v920, 0
    %v937 = vperm.slane %v921, 0
    %v938 = vperm.slane %v922, 0
    %v939 = vperm.slane %v923, 0
    %v940 = vperm.slane %v924, 0
    %v941 = vperm.slane %v925, 0
    %v958 = vmul.f32 %v708, %v926
    %v959 = vmul.f32 %v714, %v926
    %v960 = vmul.f32 %v721, %v927
    %v961 = vmul.f32 %v727, %v927
    %v962 = vmul.f32 %v734, %v928
    %v963 = vmul.f32 %v740, %v928
    %v964 = vmul.f32 %v747, %v929
    %v965 = vmul.f32 %v753, %v929
    %v966 = vmul.f32 %v760, %v930
    %v967 = vmul.f32 %v766, %v930
    %v968 = vmul.f32 %v773, %v931
    %v969 = vmul.f32 %v779, %v931
    %v970 = vmul.f32 %v786, %v932
    %v971 = vmul.f32 %v792, %v932
    %v972 = vmul.f32 %v799, %v933
    %v973 = vmul.f32 %v805, %v933
    %v974 = vmul.f32 %v812, %v934
    %v975 = vmul.f32 %v818, %v934
    %v976 = vmul.f32 %v825, %v935
    %v977 = vmul.f32 %v831, %v935
    %v978 = vmul.f32 %v838, %v936
    %v979 = vmul.f32 %v844, %v936
    %v980 = vmul.f32 %v851, %v937
    %v981 = vmul.f32 %v857, %v937
    %v982 = vmul.f32 %v864, %v938
    %v983 = vmul.f32 %v870, %v938
    %v984 = vmul.f32 %v877, %v939
    %v985 = vmul.f32 %v883, %v939
    %v986 = vmul.f32 %v890, %v940
    %v987 = vmul.f32 %v896, %v940
    %v988 = vmul.f32 %v903, %v941
    %v989 = vmul.f32 %v909, %v941
    %1022 = vrot.lane.b32.xlu0 %v958, 96
    %v1023 = vpop.permute.xlu0 %1022
    %1024 = vrot.lane.b32.xlu0 %v959, 96
    %v1025 = vpop.permute.xlu0 %1024
    %1026 = vrot.lane.b32.xlu0 %v960, 96
    %v1027 = vpop.permute.xlu0 %1026
    %1028 = vrot.lane.b32.xlu0 %v961, 96
    %v1029 = vpop.permute.xlu0 %1028
    %1030 = vrot.lane.b32.xlu0 %v962, 96
    %v1031 = vpop.permute.xlu0 %1030
    %1032 = vrot.lane.b32.xlu0 %v963, 96
    %v1033 = vpop.permute.xlu0 %1032
    %1034 = vrot.lane.b32.xlu0 %v964, 96
    %v1035 = vpop.permute.xlu0 %1034
    %1036 = vrot.lane.b32.xlu0 %v965, 96
    %v1037 = vpop.permute.xlu0 %1036
    %1038 = vrot.lane.b32.xlu0 %v966, 96
    %v1039 = vpop.permute.xlu0 %1038
    %1040 = vrot.lane.b32.xlu0 %v967, 96
    %v1041 = vpop.permute.xlu0 %1040
    %1042 = vrot.lane.b32.xlu0 %v968, 96
    %v1043 = vpop.permute.xlu0 %1042
    %1044 = vrot.lane.b32.xlu0 %v969, 96
    %v1045 = vpop.permute.xlu0 %1044
    %1046 = vrot.lane.b32.xlu0 %v970, 96
    %v1047 = vpop.permute.xlu0 %1046
    %1048 = vrot.lane.b32.xlu0 %v971, 96
    %v1049 = vpop.permute.xlu0 %1048
    %1050 = vrot.lane.b32.xlu0 %v972, 96
    %v1051 = vpop.permute.xlu0 %1050
    %1052 = vrot.lane.b32.xlu0 %v973, 96
    %v1053 = vpop.permute.xlu0 %1052
    %1054 = vrot.lane.b32.xlu0 %v974, 96
    %v1055 = vpop.permute.xlu0 %1054
    %1056 = vrot.lane.b32.xlu0 %v975, 96
    %v1057 = vpop.permute.xlu0 %1056
    %1058 = vrot.lane.b32.xlu0 %v976, 96
    %v1059 = vpop.permute.xlu0 %1058
    %1060 = vrot.lane.b32.xlu0 %v977, 96
    %v1061 = vpop.permute.xlu0 %1060
    %1062 = vrot.lane.b32.xlu0 %v978, 96
    %v1063 = vpop.permute.xlu0 %1062
    %1064 = vrot.lane.b32.xlu0 %v979, 96
    %v1065 = vpop.permute.xlu0 %1064
    %1066 = vrot.lane.b32.xlu0 %v980, 96
    %v1067 = vpop.permute.xlu0 %1066
    %1068 = vrot.lane.b32.xlu0 %v981, 96
    %v1069 = vpop.permute.xlu0 %1068
    %1070 = vrot.lane.b32.xlu0 %v982, 96
    %v1071 = vpop.permute.xlu0 %1070
    %1072 = vrot.lane.b32.xlu0 %v983, 96
    %v1073 = vpop.permute.xlu0 %1072
    %1074 = vrot.lane.b32.xlu0 %v984, 96
    %v1075 = vpop.permute.xlu0 %1074
    %1076 = vrot.lane.b32.xlu0 %v985, 96
    %v1077 = vpop.permute.xlu0 %1076
    %1078 = vrot.lane.b32.xlu0 %v986, 96
    %v1079 = vpop.permute.xlu0 %1078
    %1080 = vrot.lane.b32.xlu0 %v987, 96
    %v1081 = vpop.permute.xlu0 %1080
    %1082 = vrot.lane.b32.xlu0 %v988, 96
    %v1083 = vpop.permute.xlu0 %1082
    %1084 = vrot.lane.b32.xlu0 %v989, 96
    %v1085 = vpop.permute.xlu0 %1084
    %1118 = vst.msk [vmem:[#allocation3] sm:$0xff] %vm110, %v1023
    %1119 = vst.msk [vmem:[#allocation3 + $0x8] sm:$0xff] %vm110, %v1025
    %1120 = vst.msk [vmem:[#allocation3 + $0x10] sm:$0xff] %vm110, %v1027
    %1121 = vst.msk [vmem:[#allocation3 + $0x18] sm:$0xff] %vm110, %v1029
    %1122 = vst.msk [vmem:[#allocation3 + $0x20] sm:$0xff] %vm110, %v1031
    %1123 = vst.msk [vmem:[#allocation3 + $0x28] sm:$0xff] %vm110, %v1033
    %1124 = vst.msk [vmem:[#allocation3 + $0x30] sm:$0xff] %vm110, %v1035
    %1125 = vst.msk [vmem:[#allocation3 + $0x38] sm:$0xff] %vm110, %v1037
    %1126 = vst.msk [vmem:[#allocation3 + $0x40] sm:$0xff] %vm110, %v1039
    %1127 = vst.msk [vmem:[#allocation3 + $0x48] sm:$0xff] %vm110, %v1041
    %1128 = vst.msk [vmem:[#allocation3 + $0x50] sm:$0xff] %vm110, %v1043
    %1129 = vst.msk [vmem:[#allocation3 + $0x58] sm:$0xff] %vm110, %v1045
    %1130 = vst.msk [vmem:[#allocation3 + $0x60] sm:$0xff] %vm110, %v1047
    %1131 = vst.msk [vmem:[#allocation3 + $0x68] sm:$0xff] %vm110, %v1049
    %1132 = vst.msk [vmem:[#allocation3 + $0x70] sm:$0xff] %vm110, %v1051
    %1133 = vst.msk [vmem:[#allocation3 + $0x78] sm:$0xff] %vm110, %v1053
    %1134 = vst.msk [vmem:[#allocation3 + $0x80] sm:$0xff] %vm110, %v1055
    %1135 = vst.msk [vmem:[#allocation3 + $0x88] sm:$0xff] %vm110, %v1057
    %1136 = vst.msk [vmem:[#allocation3 + $0x90] sm:$0xff] %vm110, %v1059
    %1137 = vst.msk [vmem:[#allocation3 + $0x98] sm:$0xff] %vm110, %v1061
    %1138 = vst.msk [vmem:[#allocation3 + $0xa0] sm:$0xff] %vm110, %v1063
    %1139 = vst.msk [vmem:[#allocation3 + $0xa8] sm:$0xff] %vm110, %v1065
    %1140 = vst.msk [vmem:[#allocation3 + $0xb0] sm:$0xff] %vm110, %v1067
    %1141 = vst.msk [vmem:[#allocation3 + $0xb8] sm:$0xff] %vm110, %v1069
    %1142 = vst.msk [vmem:[#allocation3 + $0xc0] sm:$0xff] %vm110, %v1071
    %1143 = vst.msk [vmem:[#allocation3 + $0xc8] sm:$0xff] %vm110, %v1073
    %1144 = vst.msk [vmem:[#allocation3 + $0xd0] sm:$0xff] %vm110, %v1075
    %1145 = vst.msk [vmem:[#allocation3 + $0xd8] sm:$0xff] %vm110, %v1077
    %1146 = vst.msk [vmem:[#allocation3 + $0xe0] sm:$0xff] %vm110, %v1079
    %1147 = vst.msk [vmem:[#allocation3 + $0xe8] sm:$0xff] %vm110, %v1081
    %1148 = vst.msk [vmem:[#allocation3 + $0xf0] sm:$0xff] %vm110, %v1083
    %1149 = vst.msk [vmem:[#allocation3 + $0xf8] sm:$0xff] %vm110, %v1085
    %v1150 = vld [vmem:[#allocation2] sm:$0xff]
    %v1151 = vld [vmem:[#allocation2 + $0x8] sm:$0xff]
    %v1152 = vmul.f32 %v1150, 0.0
    %v1153 = vmul.f32 %v1151, 0.0
    %v1154 = vld [vmem:[#allocation3] sm:$0xff]
    %v1155 = vld [vmem:[#allocation3 + $0x8] sm:$0xff]
    %v1156 = vadd.f32 %v1152, %v1154
    %v1157 = vadd.f32 %v1153, %v1155
    %1158 = vst.msk [vmem:[#allocation4] sm:$0xff] %vm110, %v1156
    %1159 = vst.msk [vmem:[#allocation4 + $0x8] sm:$0xff] %vm110, %v1157
    %s1160 = scalar_lea.vmem [#allocation2], 16
    %v1161 = vld [vmem:[%s1160] sm:$0xff]
    %v1162 = vld [vmem:[%s1160 + $0x8] sm:$0xff]
    %v1163 = vmul.f32 %v1161, %v1156
    %v1164 = vmul.f32 %v1162, %v1157
    %s1165 = scalar_lea.vmem [#allocation3], 16
    %v1166 = vld [vmem:[%s1165] sm:$0xff]
    %v1167 = vld [vmem:[%s1165 + $0x8] sm:$0xff]
    %v1168 = vadd.f32 %v1163, %v1166
    %v1169 = vadd.f32 %v1164, %v1167
    %s1170 = scalar_lea.vmem [#allocation4], 16
    %1171 = vst.msk [vmem:[%s1170] sm:$0xff] %vm110, %v1168
    %1172 = vst.msk [vmem:[%s1170 + $0x8] sm:$0xff] %vm110, %v1169
    %s1173 = scalar_lea.vmem [#allocation2], 32
    %v1174 = vld [vmem:[%s1173] sm:$0xff]
    %v1175 = vld [vmem:[%s1173 + $0x8] sm:$0xff]
    %v1176 = vmul.f32 %v1174, %v1168
    %v1177 = vmul.f32 %v1175, %v1169
    %s1178 = scalar_lea.vmem [#allocation3], 32
    %v1179 = vld [vmem:[%s1178] sm:$0xff]
    %v1180 = vld [vmem:[%s1178 + $0x8] sm:$0xff]
    %v1181 = vadd.f32 %v1176, %v1179
    %v1182 = vadd.f32 %v1177, %v1180
    %s1183 = scalar_lea.vmem [#allocation4], 32
    %1184 = vst.msk [vmem:[%s1183] sm:$0xff] %vm110, %v1181
    %1185 = vst.msk [vmem:[%s1183 + $0x8] sm:$0xff] %vm110, %v1182
    %s1186 = scalar_lea.vmem [#allocation2], 48
    %v1187 = vld [vmem:[%s1186] sm:$0xff]
    %v1188 = vld [vmem:[%s1186 + $0x8] sm:$0xff]
    %v1189 = vmul.f32 %v1187, %v1181
    %v1190 = vmul.f32 %v1188, %v1182
    %s1191 = scalar_lea.vmem [#allocation3], 48
    %v1192 = vld [vmem:[%s1191] sm:$0xff]
    %v1193 = vld [vmem:[%s1191 + $0x8] sm:$0xff]
    %v1194 = vadd.f32 %v1189, %v1192
    %v1195 = vadd.f32 %v1190, %v1193
    %s1196 = scalar_lea.vmem [#allocation4], 48
    %1197 = vst.msk [vmem:[%s1196] sm:$0xff] %vm110, %v1194
    %1198 = vst.msk [vmem:[%s1196 + $0x8] sm:$0xff] %vm110, %v1195
    %s1199 = scalar_lea.vmem [#allocation2], 64
    %v1200 = vld [vmem:[%s1199] sm:$0xff]
    %v1201 = vld [vmem:[%s1199 + $0x8] sm:$0xff]
    %v1202 = vmul.f32 %v1200, %v1194
    %v1203 = vmul.f32 %v1201, %v1195
    %s1204 = scalar_lea.vmem [#allocation3], 64
    %v1205 = vld [vmem:[%s1204] sm:$0xff]
    %v1206 = vld [vmem:[%s1204 + $0x8] sm:$0xff]
    %v1207 = vadd.f32 %v1202, %v1205
    %v1208 = vadd.f32 %v1203, %v1206
    %s1209 = scalar_lea.vmem [#allocation4], 64
    %1210 = vst.msk [vmem:[%s1209] sm:$0xff] %vm110, %v1207
    %1211 = vst.msk [vmem:[%s1209 + $0x8] sm:$0xff] %vm110, %v1208
    %s1212 = scalar_lea.vmem [#allocation2], 80
    %v1213 = vld [vmem:[%s1212] sm:$0xff]
    %v1214 = vld [vmem:[%s1212 + $0x8] sm:$0xff]
    %v1215 = vmul.f32 %v1213, %v1207
    %v1216 = vmul.f32 %v1214, %v1208
    %s1217 = scalar_lea.vmem [#allocation3], 80
    %v1218 = vld [vmem:[%s1217] sm:$0xff]
    %v1219 = vld [vmem:[%s1217 + $0x8] sm:$0xff]
    %v1220 = vadd.f32 %v1215, %v1218
    %v1221 = vadd.f32 %v1216, %v1219
    %s1222 = scalar_lea.vmem [#allocation4], 80
    %1223 = vst.msk [vmem:[%s1222] sm:$0xff] %vm110, %v1220
    %1224 = vst.msk [vmem:[%s1222 + $0x8] sm:$0xff] %vm110, %v1221
    %s1225 = scalar_lea.vmem [#allocation2], 96
    %v1226 = vld [vmem:[%s1225] sm:$0xff]
    %v1227 = vld [vmem:[%s1225 + $0x8] sm:$0xff]
    %v1228 = vmul.f32 %v1226, %v1220
    %v1229 = vmul.f32 %v1227, %v1221
    %s1230 = scalar_lea.vmem [#allocation3], 96
    %v1231 = vld [vmem:[%s1230] sm:$0xff]
    %v1232 = vld [vmem:[%s1230 + $0x8] sm:$0xff]
    %v1233 = vadd.f32 %v1228, %v1231
    %v1234 = vadd.f32 %v1229, %v1232
    %s1235 = scalar_lea.vmem [#allocation4], 96
    %1236 = vst.msk [vmem:[%s1235] sm:$0xff] %vm110, %v1233
    %1237 = vst.msk [vmem:[%s1235 + $0x8] sm:$0xff] %vm110, %v1234
    %s1238 = scalar_lea.vmem [#allocation2], 112
    %v1239 = vld [vmem:[%s1238] sm:$0xff]
    %v1240 = vld [vmem:[%s1238 + $0x8] sm:$0xff]
    %v1241 = vmul.f32 %v1239, %v1233
    %v1242 = vmul.f32 %v1240, %v1234
    %s1243 = scalar_lea.vmem [#allocation3], 112
    %v1244 = vld [vmem:[%s1243] sm:$0xff]
    %v1245 = vld [vmem:[%s1243 + $0x8] sm:$0xff]
    %v1246 = vadd.f32 %v1241, %v1244
    %v1247 = vadd.f32 %v1242, %v1245
    %s1248 = scalar_lea.vmem [#allocation4], 112
    %1249 = vst.msk [vmem:[%s1248] sm:$0xff] %vm110, %v1246
    %1250 = vst.msk [vmem:[%s1248 + $0x8] sm:$0xff] %vm110, %v1247
    %s1251 = scalar_lea.vmem [#allocation2], 128
    %v1252 = vld [vmem:[%s1251] sm:$0xff]
    %v1253 = vld [vmem:[%s1251 + $0x8] sm:$0xff]
    %v1254 = vmul.f32 %v1252, %v1246
    %v1255 = vmul.f32 %v1253, %v1247
    %s1256 = scalar_lea.vmem [#allocation3], 128
    %v1257 = vld [vmem:[%s1256] sm:$0xff]
    %v1258 = vld [vmem:[%s1256 + $0x8] sm:$0xff]
    %v1259 = vadd.f32 %v1254, %v1257
    %v1260 = vadd.f32 %v1255, %v1258
    %s1261 = scalar_lea.vmem [#allocation4], 128
    %1262 = vst.msk [vmem:[%s1261] sm:$0xff] %vm110, %v1259
    %1263 = vst.msk [vmem:[%s1261 + $0x8] sm:$0xff] %vm110, %v1260
    %s1264 = scalar_lea.vmem [#allocation2], 144
    %v1265 = vld [vmem:[%s1264] sm:$0xff]
    %v1266 = vld [vmem:[%s1264 + $0x8] sm:$0xff]
    %v1267 = vmul.f32 %v1265, %v1259
    %v1268 = vmul.f32 %v1266, %v1260
    %s1269 = scalar_lea.vmem [#allocation3], 144
    %v1270 = vld [vmem:[%s1269] sm:$0xff]
    %v1271 = vld [vmem:[%s1269 + $0x8] sm:$0xff]
    %v1272 = vadd.f32 %v1267, %v1270
    %v1273 = vadd.f32 %v1268, %v1271
    %s1274 = scalar_lea.vmem [#allocation4], 144
    %1275 = vst.msk [vmem:[%s1274] sm:$0xff] %vm110, %v1272
    %1276 = vst.msk [vmem:[%s1274 + $0x8] sm:$0xff] %vm110, %v1273
    %s1277 = scalar_lea.vmem [#allocation2], 160
    %v1278 = vld [vmem:[%s1277] sm:$0xff]
    %v1279 = vld [vmem:[%s1277 + $0x8] sm:$0xff]
    %v1280 = vmul.f32 %v1278, %v1272
    %v1281 = vmul.f32 %v1279, %v1273
    %s1282 = scalar_lea.vmem [#allocation3], 160
    %v1283 = vld [vmem:[%s1282] sm:$0xff]
    %v1284 = vld [vmem:[%s1282 + $0x8] sm:$0xff]
    %v1285 = vadd.f32 %v1280, %v1283
    %v1286 = vadd.f32 %v1281, %v1284
    %s1287 = scalar_lea.vmem [#allocation4], 160
    %1288 = vst.msk [vmem:[%s1287] sm:$0xff] %vm110, %v1285
    %1289 = vst.msk [vmem:[%s1287 + $0x8] sm:$0xff] %vm110, %v1286
    %s1290 = scalar_lea.vmem [#allocation2], 176
    %v1291 = vld [vmem:[%s1290] sm:$0xff]
    %v1292 = vld [vmem:[%s1290 + $0x8] sm:$0xff]
    %v1293 = vmul.f32 %v1291, %v1285
    %v1294 = vmul.f32 %v1292, %v1286
    %s1295 = scalar_lea.vmem [#allocation3], 176
    %v1296 = vld [vmem:[%s1295] sm:$0xff]
    %v1297 = vld [vmem:[%s1295 + $0x8] sm:$0xff]
    %v1298 = vadd.f32 %v1293, %v1296
    %v1299 = vadd.f32 %v1294, %v1297
    %s1300 = scalar_lea.vmem [#allocation4], 176
    %1301 = vst.msk [vmem:[%s1300] sm:$0xff] %vm110, %v1298
    %1302 = vst.msk [vmem:[%s1300 + $0x8] sm:$0xff] %vm110, %v1299
    %s1303 = scalar_lea.vmem [#allocation2], 192
    %v1304 = vld [vmem:[%s1303] sm:$0xff]
    %v1305 = vld [vmem:[%s1303 + $0x8] sm:$0xff]
    %v1306 = vmul.f32 %v1304, %v1298
    %v1307 = vmul.f32 %v1305, %v1299
    %s1308 = scalar_lea.vmem [#allocation3], 192
    %v1309 = vld [vmem:[%s1308] sm:$0xff]
    %v1310 = vld [vmem:[%s1308 + $0x8] sm:$0xff]
    %v1311 = vadd.f32 %v1306, %v1309
    %v1312 = vadd.f32 %v1307, %v1310
    %s1313 = scalar_lea.vmem [#allocation4], 192
    %1314 = vst.msk [vmem:[%s1313] sm:$0xff] %vm110, %v1311
    %1315 = vst.msk [vmem:[%s1313 + $0x8] sm:$0xff] %vm110, %v1312
    %s1316 = scalar_lea.vmem [#allocation2], 208
    %v1317 = vld [vmem:[%s1316] sm:$0xff]
    %v1318 = vld [vmem:[%s1316 + $0x8] sm:$0xff]
    %v1319 = vmul.f32 %v1317, %v1311
    %v1320 = vmul.f32 %v1318, %v1312
    %s1321 = scalar_lea.vmem [#allocation3], 208
    %v1322 = vld [vmem:[%s1321] sm:$0xff]
    %v1323 = vld [vmem:[%s1321 + $0x8] sm:$0xff]
    %v1324 = vadd.f32 %v1319, %v1322
    %v1325 = vadd.f32 %v1320, %v1323
    %s1326 = scalar_lea.vmem [#allocation4], 208
    %1327 = vst.msk [vmem:[%s1326] sm:$0xff] %vm110, %v1324
    %1328 = vst.msk [vmem:[%s1326 + $0x8] sm:$0xff] %vm110, %v1325
    %s1329 = scalar_lea.vmem [#allocation2], 224
    %v1330 = vld [vmem:[%s1329] sm:$0xff]
    %v1331 = vld [vmem:[%s1329 + $0x8] sm:$0xff]
    %v1332 = vmul.f32 %v1330, %v1324
    %v1333 = vmul.f32 %v1331, %v1325
    %s1334 = scalar_lea.vmem [#allocation3], 224
    %v1335 = vld [vmem:[%s1334] sm:$0xff]
    %v1336 = vld [vmem:[%s1334 + $0x8] sm:$0xff]
    %v1337 = vadd.f32 %v1332, %v1335
    %v1338 = vadd.f32 %v1333, %v1336
    %s1339 = scalar_lea.vmem [#allocation4], 224
    %1340 = vst.msk [vmem:[%s1339] sm:$0xff] %vm110, %v1337
    %1341 = vst.msk [vmem:[%s1339 + $0x8] sm:$0xff] %vm110, %v1338
    %s1342 = scalar_lea.vmem [#allocation2], 240
    %v1343 = vld [vmem:[%s1342] sm:$0xff]
    %v1344 = vld [vmem:[%s1342 + $0x8] sm:$0xff]
    %v1345 = vmul.f32 %v1343, %v1337
    %v1346 = vmul.f32 %v1344, %v1338
    %s1347 = scalar_lea.vmem [#allocation3], 240
    %v1348 = vld [vmem:[%s1347] sm:$0xff]
    %v1349 = vld [vmem:[%s1347 + $0x8] sm:$0xff]
    %v1350 = vadd.f32 %v1345, %v1348
    %v1351 = vadd.f32 %v1346, %v1349
    %s1352 = scalar_lea.vmem [#allocation4], 240
    %1353 = vst.msk [vmem:[%s1352] sm:$0xff] %vm110, %v1350
    %1354 = vst.msk [vmem:[%s1352 + $0x8] sm:$0xff] %vm110, %v1351
    %v1355 = vld [vmem:[#allocation4] sm:$0xff]
    %v1356 = vld [vmem:[#allocation4 + $0x8] sm:$0xff]
    %v1357 = vld [vmem:[#allocation4 + $0x10] sm:$0xff]
    %v1358 = vld [vmem:[#allocation4 + $0x18] sm:$0xff]
    %v1359 = vld [vmem:[#allocation4 + $0x20] sm:$0xff]
    %v1360 = vld [vmem:[#allocation4 + $0x28] sm:$0xff]
    %v1361 = vld [vmem:[#allocation4 + $0x30] sm:$0xff]
    %v1362 = vld [vmem:[#allocation4 + $0x38] sm:$0xff]
    %v1363 = vld [vmem:[#allocation4 + $0x40] sm:$0xff]
    %v1364 = vld [vmem:[#allocation4 + $0x48] sm:$0xff]
    %v1365 = vld [vmem:[#allocation4 + $0x50] sm:$0xff]
    %v1366 = vld [vmem:[#allocation4 + $0x58] sm:$0xff]
    %v1367 = vld [vmem:[#allocation4 + $0x60] sm:$0xff]
    %v1368 = vld [vmem:[#allocation4 + $0x68] sm:$0xff]
    %v1369 = vld [vmem:[#allocation4 + $0x70] sm:$0xff]
    %v1370 = vld [vmem:[#allocation4 + $0x78] sm:$0xff]
    %v1371 = vld [vmem:[#allocation4 + $0x80] sm:$0xff]
    %v1372 = vld [vmem:[#allocation4 + $0x88] sm:$0xff]
    %v1373 = vld [vmem:[#allocation4 + $0x90] sm:$0xff]
    %v1374 = vld [vmem:[#allocation4 + $0x98] sm:$0xff]
    %v1375 = vld [vmem:[#allocation4 + $0xa0] sm:$0xff]
    %v1376 = vld [vmem:[#allocation4 + $0xa8] sm:$0xff]
    %v1377 = vld [vmem:[#allocation4 + $0xb0] sm:$0xff]
    %v1378 = vld [vmem:[#allocation4 + $0xb8] sm:$0xff]
    %v1379 = vld [vmem:[#allocation4 + $0xc0] sm:$0xff]
    %v1380 = vld [vmem:[#allocation4 + $0xc8] sm:$0xff]
    %v1381 = vld [vmem:[#allocation4 + $0xd0] sm:$0xff]
    %v1382 = vld [vmem:[#allocation4 + $0xd8] sm:$0xff]
    %v1383 = vld [vmem:[#allocation4 + $0xe0] sm:$0xff]
    %v1384 = vld [vmem:[#allocation4 + $0xe8] sm:$0xff]
    %v1385 = vld [vmem:[#allocation4 + $0xf0] sm:$0xff]
    %v1386 = vld [vmem:[#allocation4 + $0xf8] sm:$0xff]
    %v1387 = vlaneseq
    %v1388 = vshrl.u32 %v1387, 7
    %v1389 = vadd.s32 %v1388, 16
    %1390 = vset.pattern.permute.xlu0 %v1389
    %1391 = vperm.xlu0 %1390, %v702
    %v1392 = vpop.permute.xlu0 %1391
    %v1393 = vlaneseq
    %v1394 = vshrl.u32 %v1393, 7
    %v1395 = vadd.s32 %v1394, 24
    %1396 = vset.pattern.permute.xlu0 %v1395
    %1397 = vperm.xlu0 %1396, %v702
    %v1398 = vpop.permute.xlu0 %1397
    %v1399 = vlaneseq
    %v1400 = vshrl.u32 %v1399, 7
    %v1401 = vadd.s32 %v1400, 16
    %1402 = vset.pattern.permute.xlu0 %v1401
    %1403 = vperm.xlu0 %1402, %v715
    %v1404 = vpop.permute.xlu0 %1403
    %v1405 = vlaneseq
    %v1406 = vshrl.u32 %v1405, 7
    %v1407 = vadd.s32 %v1406, 24
    %1408 = vset.pattern.permute.xlu0 %v1407
    %1409 = vperm.xlu0 %1408, %v715
    %v1410 = vpop.permute.xlu0 %1409
    %v1411 = vlaneseq
    %v1412 = vshrl.u32 %v1411, 7
    %v1413 = vadd.s32 %v1412, 16
    %1414 = vset.pattern.permute.xlu0 %v1413
    %1415 = vperm.xlu0 %1414, %v728
    %v1416 = vpop.permute.xlu0 %1415
    %v1417 = vlaneseq
    %v1418 = vshrl.u32 %v1417, 7
    %v1419 = vadd.s32 %v1418, 24
    %1420 = vset.pattern.permute.xlu0 %v1419
    %1421 = vperm.xlu0 %1420, %v728
    %v1422 = vpop.permute.xlu0 %1421
    %v1423 = vlaneseq
    %v1424 = vshrl.u32 %v1423, 7
    %v1425 = vadd.s32 %v1424, 16
    %1426 = vset.pattern.permute.xlu0 %v1425
    %1427 = vperm.xlu0 %1426, %v741
    %v1428 = vpop.permute.xlu0 %1427
    %v1429 = vlaneseq
    %v1430 = vshrl.u32 %v1429, 7
    %v1431 = vadd.s32 %v1430, 24
    %1432 = vset.pattern.permute.xlu0 %v1431
    %1433 = vperm.xlu0 %1432, %v741
    %v1434 = vpop.permute.xlu0 %1433
    %v1435 = vlaneseq
    %v1436 = vshrl.u32 %v1435, 7
    %v1437 = vadd.s32 %v1436, 16
    %1438 = vset.pattern.permute.xlu0 %v1437
    %1439 = vperm.xlu0 %1438, %v754
    %v1440 = vpop.permute.xlu0 %1439
    %v1441 = vlaneseq
    %v1442 = vshrl.u32 %v1441, 7
    %v1443 = vadd.s32 %v1442, 24
    %1444 = vset.pattern.permute.xlu0 %v1443
    %1445 = vperm.xlu0 %1444, %v754
    %v1446 = vpop.permute.xlu0 %1445
    %v1447 = vlaneseq
    %v1448 = vshrl.u32 %v1447, 7
    %v1449 = vadd.s32 %v1448, 16
    %1450 = vset.pattern.permute.xlu0 %v1449
    %1451 = vperm.xlu0 %1450, %v767
    %v1452 = vpop.permute.xlu0 %1451
    %v1453 = vlaneseq
    %v1454 = vshrl.u32 %v1453, 7
    %v1455 = vadd.s32 %v1454, 24
    %1456 = vset.pattern.permute.xlu0 %v1455
    %1457 = vperm.xlu0 %1456, %v767
    %v1458 = vpop.permute.xlu0 %1457
    %v1459 = vlaneseq
    %v1460 = vshrl.u32 %v1459, 7
    %v1461 = vadd.s32 %v1460, 16
    %1462 = vset.pattern.permute.xlu0 %v1461
    %1463 = vperm.xlu0 %1462, %v780
    %v1464 = vpop.permute.xlu0 %1463
    %v1465 = vlaneseq
    %v1466 = vshrl.u32 %v1465, 7
    %v1467 = vadd.s32 %v1466, 24
    %1468 = vset.pattern.permute.xlu0 %v1467
    %1469 = vperm.xlu0 %1468, %v780
    %v1470 = vpop.permute.xlu0 %1469
    %v1471 = vlaneseq
    %v1472 = vshrl.u32 %v1471, 7
    %v1473 = vadd.s32 %v1472, 16
    %1474 = vset.pattern.permute.xlu0 %v1473
    %1475 = vperm.xlu0 %1474, %v793
    %v1476 = vpop.permute.xlu0 %1475
    %v1477 = vlaneseq
    %v1478 = vshrl.u32 %v1477, 7
    %v1479 = vadd.s32 %v1478, 24
    %1480 = vset.pattern.permute.xlu0 %v1479
    %1481 = vperm.xlu0 %1480, %v793
    %v1482 = vpop.permute.xlu0 %1481
    %v1483 = vlaneseq
    %v1484 = vshrl.u32 %v1483, 7
    %v1485 = vadd.s32 %v1484, 16
    %1486 = vset.pattern.permute.xlu0 %v1485
    %1487 = vperm.xlu0 %1486, %v806
    %v1488 = vpop.permute.xlu0 %1487
    %v1489 = vlaneseq
    %v1490 = vshrl.u32 %v1489, 7
    %v1491 = vadd.s32 %v1490, 24
    %1492 = vset.pattern.permute.xlu0 %v1491
    %1493 = vperm.xlu0 %1492, %v806
    %v1494 = vpop.permute.xlu0 %1493
    %v1495 = vlaneseq
    %v1496 = vshrl.u32 %v1495, 7
    %v1497 = vadd.s32 %v1496, 16
    %1498 = vset.pattern.permute.xlu0 %v1497
    %1499 = vperm.xlu0 %1498, %v819
    %v1500 = vpop.permute.xlu0 %1499
    %v1501 = vlaneseq
    %v1502 = vshrl.u32 %v1501, 7
    %v1503 = vadd.s32 %v1502, 24
    %1504 = vset.pattern.permute.xlu0 %v1503
    %1505 = vperm.xlu0 %1504, %v819
    %v1506 = vpop.permute.xlu0 %1505
    %v1507 = vlaneseq
    %v1508 = vshrl.u32 %v1507, 7
    %v1509 = vadd.s32 %v1508, 16
    %1510 = vset.pattern.permute.xlu0 %v1509
    %1511 = vperm.xlu0 %1510, %v832
    %v1512 = vpop.permute.xlu0 %1511
    %v1513 = vlaneseq
    %v1514 = vshrl.u32 %v1513, 7
    %v1515 = vadd.s32 %v1514, 24
    %1516 = vset.pattern.permute.xlu0 %v1515
    %1517 = vperm.xlu0 %1516, %v832
    %v1518 = vpop.permute.xlu0 %1517
    %v1519 = vlaneseq
    %v1520 = vshrl.u32 %v1519, 7
    %v1521 = vadd.s32 %v1520, 16
    %1522 = vset.pattern.permute.xlu0 %v1521
    %1523 = vperm.xlu0 %1522, %v845
    %v1524 = vpop.permute.xlu0 %1523
    %v1525 = vlaneseq
    %v1526 = vshrl.u32 %v1525, 7
    %v1527 = vadd.s32 %v1526, 24
    %1528 = vset.pattern.permute.xlu0 %v1527
    %1529 = vperm.xlu0 %1528, %v845
    %v1530 = vpop.permute.xlu0 %1529
    %v1531 = vlaneseq
    %v1532 = vshrl.u32 %v1531, 7
    %v1533 = vadd.s32 %v1532, 16
    %1534 = vset.pattern.permute.xlu0 %v1533
    %1535 = vperm.xlu0 %1534, %v858
    %v1536 = vpop.permute.xlu0 %1535
    %v1537 = vlaneseq
    %v1538 = vshrl.u32 %v1537, 7
    %v1539 = vadd.s32 %v1538, 24
    %1540 = vset.pattern.permute.xlu0 %v1539
    %1541 = vperm.xlu0 %1540, %v858
    %v1542 = vpop.permute.xlu0 %1541
    %v1543 = vlaneseq
    %v1544 = vshrl.u32 %v1543, 7
    %v1545 = vadd.s32 %v1544, 16
    %1546 = vset.pattern.permute.xlu0 %v1545
    %1547 = vperm.xlu0 %1546, %v871
    %v1548 = vpop.permute.xlu0 %1547
    %v1549 = vlaneseq
    %v1550 = vshrl.u32 %v1549, 7
    %v1551 = vadd.s32 %v1550, 24
    %1552 = vset.pattern.permute.xlu0 %v1551
    %1553 = vperm.xlu0 %1552, %v871
    %v1554 = vpop.permute.xlu0 %1553
    %v1555 = vlaneseq
    %v1556 = vshrl.u32 %v1555, 7
    %v1557 = vadd.s32 %v1556, 16
    %1558 = vset.pattern.permute.xlu0 %v1557
    %1559 = vperm.xlu0 %1558, %v884
    %v1560 = vpop.permute.xlu0 %1559
    %v1561 = vlaneseq
    %v1562 = vshrl.u32 %v1561, 7
    %v1563 = vadd.s32 %v1562, 24
    %1564 = vset.pattern.permute.xlu0 %v1563
    %1565 = vperm.xlu0 %1564, %v884
    %v1566 = vpop.permute.xlu0 %1565
    %v1567 = vlaneseq
    %v1568 = vshrl.u32 %v1567, 7
    %v1569 = vadd.s32 %v1568, 16
    %1570 = vset.pattern.permute.xlu0 %v1569
    %1571 = vperm.xlu0 %1570, %v897
    %v1572 = vpop.permute.xlu0 %1571
    %v1573 = vlaneseq
    %v1574 = vshrl.u32 %v1573, 7
    %v1575 = vadd.s32 %v1574, 24
    %1576 = vset.pattern.permute.xlu0 %v1575
    %1577 = vperm.xlu0 %1576, %v897
    %v1578 = vpop.permute.xlu0 %1577
    %v1579 = vmul.f32 %v1355, %v1392
    %v1580 = vmul.f32 %v1356, %v1398
    %v1581 = vmul.f32 %v1357, %v1404
    %v1582 = vmul.f32 %v1358, %v1410
    %v1583 = vmul.f32 %v1359, %v1416
    %v1584 = vmul.f32 %v1360, %v1422
    %v1585 = vmul.f32 %v1361, %v1428
    %v1586 = vmul.f32 %v1362, %v1434
    %v1587 = vmul.f32 %v1363, %v1440
    %v1588 = vmul.f32 %v1364, %v1446
    %v1589 = vmul.f32 %v1365, %v1452
    %v1590 = vmul.f32 %v1366, %v1458
    %v1591 = vmul.f32 %v1367, %v1464
    %v1592 = vmul.f32 %v1368, %v1470
    %v1593 = vmul.f32 %v1369, %v1476
    %v1594 = vmul.f32 %v1370, %v1482
    %v1595 = vmul.f32 %v1371, %v1488
    %v1596 = vmul.f32 %v1372, %v1494
    %v1597 = vmul.f32 %v1373, %v1500
    %v1598 = vmul.f32 %v1374, %v1506
    %v1599 = vmul.f32 %v1375, %v1512
    %v1600 = vmul.f32 %v1376, %v1518
    %v1601 = vmul.f32 %v1377, %v1524
    %v1602 = vmul.f32 %v1378, %v1530
    %v1603 = vmul.f32 %v1379, %v1536
    %v1604 = vmul.f32 %v1380, %v1542
    %v1605 = vmul.f32 %v1381, %v1548
    %v1606 = vmul.f32 %v1382, %v1554
    %v1607 = vmul.f32 %v1383, %v1560
    %v1608 = vmul.f32 %v1384, %v1566
    %v1609 = vmul.f32 %v1385, %v1572
    %v1610 = vmul.f32 %v1386, %v1578
    %v1611 = vsel %vm110, %v1579, 0.0
    %v1612 = vsel %vm110, %v1580, 0.0
    %v1613 = vadd.f32 %v1611, %v1612
    %v1614 = vrot.slane %v1613, 4
    %v1615 = vadd.f32 %v1613, %v1614
    %v1616 = vrot.slane %v1615, 2
    %v1617 = vadd.f32 %v1615, %v1616
    %v1618 = vrot.slane %v1617, 1
    %v1619 = vadd.f32 %v1617, %v1618
    %v1620 = vsel %vm110, %v1581, 0.0
    %v1621 = vsel %vm110, %v1582, 0.0
    %v1622 = vadd.f32 %v1620, %v1621
    %v1623 = vrot.slane %v1622, 4
    %v1624 = vadd.f32 %v1622, %v1623
    %v1625 = vrot.slane %v1624, 2
    %v1626 = vadd.f32 %v1624, %v1625
    %v1627 = vrot.slane %v1626, 1
    %v1628 = vadd.f32 %v1626, %v1627
    %v1629 = vsel %vm110, %v1583, 0.0
    %v1630 = vsel %vm110, %v1584, 0.0
    %v1631 = vadd.f32 %v1629, %v1630
    %v1632 = vrot.slane %v1631, 4
    %v1633 = vadd.f32 %v1631, %v1632
    %v1634 = vrot.slane %v1633, 2
    %v1635 = vadd.f32 %v1633, %v1634
    %v1636 = vrot.slane %v1635, 1
    %v1637 = vadd.f32 %v1635, %v1636
    %v1638 = vsel %vm110, %v1585, 0.0
    %v1639 = vsel %vm110, %v1586, 0.0
    %v1640 = vadd.f32 %v1638, %v1639
    %v1641 = vrot.slane %v1640, 4
    %v1642 = vadd.f32 %v1640, %v1641
    %v1643 = vrot.slane %v1642, 2
    %v1644 = vadd.f32 %v1642, %v1643
    %v1645 = vrot.slane %v1644, 1
    %v1646 = vadd.f32 %v1644, %v1645
    %v1647 = vsel %vm110, %v1587, 0.0
    %v1648 = vsel %vm110, %v1588, 0.0
    %v1649 = vadd.f32 %v1647, %v1648
    %v1650 = vrot.slane %v1649, 4
    %v1651 = vadd.f32 %v1649, %v1650
    %v1652 = vrot.slane %v1651, 2
    %v1653 = vadd.f32 %v1651, %v1652
    %v1654 = vrot.slane %v1653, 1
    %v1655 = vadd.f32 %v1653, %v1654
    %v1656 = vsel %vm110, %v1589, 0.0
    %v1657 = vsel %vm110, %v1590, 0.0
    %v1658 = vadd.f32 %v1656, %v1657
    %v1659 = vrot.slane %v1658, 4
    %v1660 = vadd.f32 %v1658, %v1659
    %v1661 = vrot.slane %v1660, 2
    %v1662 = vadd.f32 %v1660, %v1661
    %v1663 = vrot.slane %v1662, 1
    %v1664 = vadd.f32 %v1662, %v1663
    %v1665 = vsel %vm110, %v1591, 0.0
    %v1666 = vsel %vm110, %v1592, 0.0
    %v1667 = vadd.f32 %v1665, %v1666
    %v1668 = vrot.slane %v1667, 4
    %v1669 = vadd.f32 %v1667, %v1668
    %v1670 = vrot.slane %v1669, 2
    %v1671 = vadd.f32 %v1669, %v1670
    %v1672 = vrot.slane %v1671, 1
    %v1673 = vadd.f32 %v1671, %v1672
    %v1674 = vsel %vm110, %v1593, 0.0
    %v1675 = vsel %vm110, %v1594, 0.0
    %v1676 = vadd.f32 %v1674, %v1675
    %v1677 = vrot.slane %v1676, 4
    %v1678 = vadd.f32 %v1676, %v1677
    %v1679 = vrot.slane %v1678, 2
    %v1680 = vadd.f32 %v1678, %v1679
    %v1681 = vrot.slane %v1680, 1
    %v1682 = vadd.f32 %v1680, %v1681
    %v1683 = vsel %vm110, %v1595, 0.0
    %v1684 = vsel %vm110, %v1596, 0.0
    %v1685 = vadd.f32 %v1683, %v1684
    %v1686 = vrot.slane %v1685, 4
    %v1687 = vadd.f32 %v1685, %v1686
    %v1688 = vrot.slane %v1687, 2
    %v1689 = vadd.f32 %v1687, %v1688
    %v1690 = vrot.slane %v1689, 1
    %v1691 = vadd.f32 %v1689, %v1690
    %v1692 = vsel %vm110, %v1597, 0.0
    %v1693 = vsel %vm110, %v1598, 0.0
    %v1694 = vadd.f32 %v1692, %v1693
    %v1695 = vrot.slane %v1694, 4
    %v1696 = vadd.f32 %v1694, %v1695
    %v1697 = vrot.slane %v1696, 2
    %v1698 = vadd.f32 %v1696, %v1697
    %v1699 = vrot.slane %v1698, 1
    %v1700 = vadd.f32 %v1698, %v1699
    %v1701 = vsel %vm110, %v1599, 0.0
    %v1702 = vsel %vm110, %v1600, 0.0
    %v1703 = vadd.f32 %v1701, %v1702
    %v1704 = vrot.slane %v1703, 4
    %v1705 = vadd.f32 %v1703, %v1704
    %v1706 = vrot.slane %v1705, 2
    %v1707 = vadd.f32 %v1705, %v1706
    %v1708 = vrot.slane %v1707, 1
    %v1709 = vadd.f32 %v1707, %v1708
    %v1710 = vsel %vm110, %v1601, 0.0
    %v1711 = vsel %vm110, %v1602, 0.0
    %v1712 = vadd.f32 %v1710, %v1711
    %v1713 = vrot.slane %v1712, 4
    %v1714 = vadd.f32 %v1712, %v1713
    %v1715 = vrot.slane %v1714, 2
    %v1716 = vadd.f32 %v1714, %v1715
    %v1717 = vrot.slane %v1716, 1
    %v1718 = vadd.f32 %v1716, %v1717
    %v1719 = vsel %vm110, %v1603, 0.0
    %v1720 = vsel %vm110, %v1604, 0.0
    %v1721 = vadd.f32 %v1719, %v1720
    %v1722 = vrot.slane %v1721, 4
    %v1723 = vadd.f32 %v1721, %v1722
    %v1724 = vrot.slane %v1723, 2
    %v1725 = vadd.f32 %v1723, %v1724
    %v1726 = vrot.slane %v1725, 1
    %v1727 = vadd.f32 %v1725, %v1726
    %v1728 = vsel %vm110, %v1605, 0.0
    %v1729 = vsel %vm110, %v1606, 0.0
    %v1730 = vadd.f32 %v1728, %v1729
    %v1731 = vrot.slane %v1730, 4
    %v1732 = vadd.f32 %v1730, %v1731
    %v1733 = vrot.slane %v1732, 2
    %v1734 = vadd.f32 %v1732, %v1733
    %v1735 = vrot.slane %v1734, 1
    %v1736 = vadd.f32 %v1734, %v1735
    %v1737 = vsel %vm110, %v1607, 0.0
    %v1738 = vsel %vm110, %v1608, 0.0
    %v1739 = vadd.f32 %v1737, %v1738
    %v1740 = vrot.slane %v1739, 4
    %v1741 = vadd.f32 %v1739, %v1740
    %v1742 = vrot.slane %v1741, 2
    %v1743 = vadd.f32 %v1741, %v1742
    %v1744 = vrot.slane %v1743, 1
    %v1745 = vadd.f32 %v1743, %v1744
    %v1746 = vsel %vm110, %v1609, 0.0
    %v1747 = vsel %vm110, %v1610, 0.0
    %v1748 = vadd.f32 %v1746, %v1747
    %v1749 = vrot.slane %v1748, 4
    %v1750 = vadd.f32 %v1748, %v1749
    %v1751 = vrot.slane %v1750, 2
    %v1752 = vadd.f32 %v1750, %v1751
    %v1753 = vrot.slane %v1752, 1
    %v1754 = vadd.f32 %v1752, %v1753
    %v1755 = vld [vmem:[#allocation8 + $0x2] sm:$0x1]
    %v1756 = vperm.slane %v1755, 0
    %v1757 = vmul.f32 %v319, %v1756
    %v1758 = vmul.f32 %v320, %v1756
    %v1761 = vrot.slane %v1757, 1
    %v1762 = vrot.slane %v1757, 2
    %v1763 = vrot.slane %v1757, 3
    %v1764 = vrot.slane %v1757, 4
    %v1765 = vrot.slane %v1757, 5
    %v1766 = vrot.slane %v1757, 6
    %v1767 = vrot.slane %v1757, 7
    %v1768 = vrot.slane %v1758, 1
    %v1769 = vrot.slane %v1758, 2
    %v1770 = vrot.slane %v1758, 3
    %v1771 = vrot.slane %v1758, 4
    %v1772 = vrot.slane %v1758, 5
    %v1773 = vrot.slane %v1758, 6
    %v1774 = vrot.slane %v1758, 7
    %v1791 = vadd.f32 %v1619, %v1757
    %v1792 = vadd.f32 %v1628, %v1761
    %v1793 = vadd.f32 %v1637, %v1762
    %v1794 = vadd.f32 %v1646, %v1763
    %v1795 = vadd.f32 %v1655, %v1764
    %v1796 = vadd.f32 %v1664, %v1765
    %v1797 = vadd.f32 %v1673, %v1766
    %v1798 = vadd.f32 %v1682, %v1767
    %v1799 = vadd.f32 %v1691, %v1758
    %v1800 = vadd.f32 %v1700, %v1768
    %v1801 = vadd.f32 %v1709, %v1769
    %v1802 = vadd.f32 %v1718, %v1770
    %v1803 = vadd.f32 %v1727, %v1771
    %v1804 = vadd.f32 %v1736, %v1772
    %v1805 = vadd.f32 %v1745, %v1773
    %v1806 = vadd.f32 %v1754, %v1774
    %v1807 = vxor.u32 %v207, 2147483648
    %v1808 = vxor.u32 %v210, 2147483648
    %v1809 = vmul.f32 %v1807, 1.442695
    %v1810 = vpow.pop %v1809
    %v1811 = vmul.f32 %v1808, 1.442695
    %v1812 = vpow.pop %v1811
    %v1813 = vadd.f32 %v1810, 1.0
    %v1814 = vadd.f32 %v1812, 1.0
    %v1815 = vrcp.pop %v1813
    %v1816 = vmul.f32 %v1813, %v1815
    %v1817 = vsub.f32 1.0, %v1816
    %v1818 = vmul.f32 %v1815, %v1817
    %v1819 = vadd.f32 %v1815, %v1818
    %vm1820 = vweird.f32 %v1813
    %vm1821 = vweird.f32 %v1815
    %vm1822 = vmor %vm1820, %vm1821
    %v1823 = vsel %vm1822, %v1815, %v1819
    %v1824 = vand.u32 2147483647, %v1813
    %vm1825 = vcmp.eq.f32.partialorder %v1824, 8.507059e+37
    %v1826 = vand.u32 %v1813, 2147483648
    %v1827 = vor.u32 1.1754944e-38, %v1826
    %v1828 = vsel %vm1825, %v1827, %v1823
    %v1829 = vmul.f32 1.0, %v1828
    %v1830 = vrcp.pop %v1814
    %v1831 = vmul.f32 %v1814, %v1830
    %v1832 = vsub.f32 1.0, %v1831
    %v1833 = vmul.f32 %v1830, %v1832
    %v1834 = vadd.f32 %v1830, %v1833
    %vm1835 = vweird.f32 %v1814
    %vm1836 = vweird.f32 %v1830
    %vm1837 = vmor %vm1835, %vm1836
    %v1838 = vsel %vm1837, %v1830, %v1834
    %v1839 = vand.u32 2147483647, %v1814
    %vm1840 = vcmp.eq.f32.partialorder %v1839, 8.507059e+37
    %v1841 = vand.u32 %v1814, 2147483648
    %v1842 = vor.u32 1.1754944e-38, %v1841
    %v1843 = vsel %vm1840, %v1842, %v1838
    %v1844 = vmul.f32 1.0, %v1843
    %v1845 = vmul.f32 %v207, %v1829
    %v1846 = vmul.f32 %v210, %v1844
    %v1849 = vrot.slane %v1845, 1
    %v1850 = vrot.slane %v1845, 2
    %v1851 = vrot.slane %v1845, 3
    %v1852 = vrot.slane %v1845, 4
    %v1853 = vrot.slane %v1845, 5
    %v1854 = vrot.slane %v1845, 6
    %v1855 = vrot.slane %v1845, 7
    %v1856 = vrot.slane %v1846, 1
    %v1857 = vrot.slane %v1846, 2
    %v1858 = vrot.slane %v1846, 3
    %v1859 = vrot.slane %v1846, 4
    %v1860 = vrot.slane %v1846, 5
    %v1861 = vrot.slane %v1846, 6
    %v1862 = vrot.slane %v1846, 7
    %1863 = vrot.lane.b32.xlu0 %v1845, 96
    %v1864 = vpop.permute.xlu0 %1863
    %1865 = vrot.lane.b32.xlu0 %v1849, 96
    %v1866 = vpop.permute.xlu0 %1865
    %1867 = vrot.lane.b32.xlu0 %v1850, 96
    %v1868 = vpop.permute.xlu0 %1867
    %1869 = vrot.lane.b32.xlu0 %v1851, 96
    %v1870 = vpop.permute.xlu0 %1869
    %1871 = vrot.lane.b32.xlu0 %v1852, 96
    %v1872 = vpop.permute.xlu0 %1871
    %1873 = vrot.lane.b32.xlu0 %v1853, 96
    %v1874 = vpop.permute.xlu0 %1873
    %1875 = vrot.lane.b32.xlu0 %v1854, 96
    %v1876 = vpop.permute.xlu0 %1875
    %1877 = vrot.lane.b32.xlu0 %v1855, 96
    %v1878 = vpop.permute.xlu0 %1877
    %1879 = vrot.lane.b32.xlu0 %v1846, 96
    %v1880 = vpop.permute.xlu0 %1879
    %1881 = vrot.lane.b32.xlu0 %v1856, 96
    %v1882 = vpop.permute.xlu0 %1881
    %1883 = vrot.lane.b32.xlu0 %v1857, 96
    %v1884 = vpop.permute.xlu0 %1883
    %1885 = vrot.lane.b32.xlu0 %v1858, 96
    %v1886 = vpop.permute.xlu0 %1885
    %1887 = vrot.lane.b32.xlu0 %v1859, 96
    %v1888 = vpop.permute.xlu0 %1887
    %1889 = vrot.lane.b32.xlu0 %v1860, 96
    %v1890 = vpop.permute.xlu0 %1889
    %1891 = vrot.lane.b32.xlu0 %v1861, 96
    %v1892 = vpop.permute.xlu0 %1891
    %1893 = vrot.lane.b32.xlu0 %v1862, 96
    %v1894 = vpop.permute.xlu0 %1893
    %v1911 = vmul.f32 %v1791, %v1864
    %v1912 = vmul.f32 %v1792, %v1866
    %v1913 = vmul.f32 %v1793, %v1868
    %v1914 = vmul.f32 %v1794, %v1870
    %v1915 = vmul.f32 %v1795, %v1872
    %v1916 = vmul.f32 %v1796, %v1874
    %v1917 = vmul.f32 %v1797, %v1876
    %v1918 = vmul.f32 %v1798, %v1878
    %v1919 = vmul.f32 %v1799, %v1880
    %v1920 = vmul.f32 %v1800, %v1882
    %v1921 = vmul.f32 %v1801, %v1884
    %v1922 = vmul.f32 %v1802, %v1886
    %v1923 = vmul.f32 %v1803, %v1888
    %v1924 = vmul.f32 %v1804, %v1890
    %v1925 = vmul.f32 %v1805, %v1892
    %v1926 = vmul.f32 %v1806, %v1894
    %v1927 = vld [vmem:[%s6] sm:$0xff]
    %v1928 = vld [vmem:[%s6 + $0x8] sm:$0xff]
    %v1929 = vld [vmem:[%s6 + $0x10] sm:$0xff]
    %v1930 = vld [vmem:[%s6 + $0x18] sm:$0xff]
    %v1947 = vrot.slane %v1912, 7
    %vm1948 = vcmask 1041409
    %v1949 = vsel %vm1948, %v1947, %v1911
    %v1950 = vrot.slane %v1913, 6
    %vm1951 = vcmask 1042434
    %v1952 = vsel %vm1951, %v1950, %v1949
    %v1953 = vrot.slane %v1914, 5
    %vm1954 = vcmask 1043459
    %v1955 = vsel %vm1954, %v1953, %v1952
    %v1956 = vrot.slane %v1915, 4
    %vm1957 = vcmask 1044484
    %v1958 = vsel %vm1957, %v1956, %v1955
    %v1959 = vrot.slane %v1916, 3
    %vm1960 = vcmask 1045509
    %v1961 = vsel %vm1960, %v1959, %v1958
    %v1962 = vrot.slane %v1917, 2
    %vm1963 = vcmask 1046534
    %v1964 = vsel %vm1963, %v1962, %v1961
    %v1965 = vrot.slane %v1918, 1
    %vm1966 = vcmask 1047559
    %v1967 = vsel %vm1966, %v1965, %v1964
    %v1968 = vrot.slane %v1920, 7
    %v1969 = vsel %vm1948, %v1968, %v1919
    %v1970 = vrot.slane %v1921, 6
    %v1971 = vsel %vm1951, %v1970, %v1969
    %v1972 = vrot.slane %v1922, 5
    %v1973 = vsel %vm1954, %v1972, %v1971
    %v1974 = vrot.slane %v1923, 4
    %v1975 = vsel %vm1957, %v1974, %v1973
    %v1976 = vrot.slane %v1924, 3
    %v1977 = vsel %vm1960, %v1976, %v1975
    %v1978 = vrot.slane %v1925, 2
    %v1979 = vsel %vm1963, %v1978, %v1977
    %v1980 = vrot.slane %v1926, 1
    %v1981 = vsel %vm1966, %v1980, %v1979
    %v1982 = vsel %vm110, %v1967, 0
    %v1984 = vsel %vm110, %v1981, 0
    %1986 = vmatpush.msra.mxu0 0.0
    %1987 = vmatpush.msra.mxu0 0.0
    %1988 = vmatpush.msra.mxu0 0.0
    %1989 = vmatpush.msra.mxu0 0.0
    %1990 = vmatpush.msra.mxu0 0.0
    %1991 = vmatpush.msra.mxu0 0.0
    %1992 = vmatpush.msra.mxu0 0.0
    %1993 = vmatpush.msra.mxu0 0.0
    %1994 = vmatpush.msra.mxu0 0.0
    %1995 = vmatpush.msra.mxu0 0.0
    %1996 = vmatpush.msra.mxu0 0.0
    %1997 = vmatpush.msra.mxu0 0.0
    %1998 = vmatpush.msra.mxu0 %v1930
    %1999 = vmatpush.msra.mxu0 %v1929
    %2000 = vmatpush.msra.mxu0 %v1928
    %2001 = vmatpush.msra.mxu0 %v1927
    %2002 = vmatmul.f32.gmra.mxu0 %v1982
    %v2003 = vpop.f32.mrf.mxu0
    %v2004 = vadd.f32 0.0, %v2003
    %2005 = vmatmul.f32.gmra.mxu0 %v1984
    %v2006 = vpop.f32.mrf.mxu0
    %v2007 = vadd.f32 0.0, %v2006
    %2008 = vdwg.mxu0
    %2009 = vst.msk [vmem:[#allocation11] sm:$0xff] %vm182, %v2004
    %2010 = vst.msk [vmem:[#allocation11 + $0x8] sm:$0xff] %vm182, %v2007
    // Predicated region
    $region58: #{tpu_custom_call.1} parent=1 // pred_check
      _
    $region59: #{tpu_custom_call.1} parent=1 // pred_check_branch
      %2012 = sbr.rel (0) target = $region61
    $region60: #{tpu_custom_call.1} parent=1 // pred_region
      %2014 = vsyncadd [#allocation7], 0
      %s2015 = sshll.u32 [#allocation11], 4
      %s2016 = int_to_ptr.vmem [resolvable:$true] %s2015
      %s2017 = sshll.u32 %s11, 4
      %s2018 = int_to_ptr.hbm [resolvable:$true] %s2017
      %2023 = dma.vmem_to_hbm [thread:$0]  %s2016, 256, %s2018, [#allocation7], 128, 128, 8
    $region61: #{tpu_custom_call.1} parent=1 // pred_fallthru
      _
    // Predicated region
    $region62: #{tpu_custom_call.1} parent=1 // pred_check
      _
    $region63: #{tpu_custom_call.1} parent=1 // pred_check_branch
      %2025 = sbr.rel (0) target = $region65
    $region64: #{tpu_custom_call.1} parent=1 // pred_region
      _
    $region65: #{tpu_custom_call.1} parent=1 // pred_fallthru
      _
    // Predicated region
    $region66: #{tpu_custom_call.1} parent=1 // pred_check
      _
    $region67: #{tpu_custom_call.1} parent=1 // pred_check_branch
      %2027 = sbr.rel (0) target = $region69
    $region68: #{tpu_custom_call.1} parent=1 // pred_region
      %2029 = dma.done [#allocation7], 256
    $region69: #{tpu_custom_call.1} parent=1 // pred_fallthru
      _
    // Predicated region
    $region70: #{tpu_custom_call.1} parent=1 // pred_check
      _
    $region71: #{tpu_custom_call.1} parent=1 // pred_check_branch
      %2031 = sbr.rel (0) target = $region73
    $region72: #{tpu_custom_call.1} parent=1 // pred_region
      _
    $region73: #{tpu_custom_call.1} parent=1 // pred_fallthru
      _
    %2032 = vsyncpa [#allocation6], 1
    %2033 = vsyncpa [#allocation9], 1
    %2034 = vsyncpa [#allocation7], 1

</llo_original>
